<compile_context>
chip_gen: v7x
topology: tpu7x:2x2x1
jax: 0.10.0
libtpu: 0.0.40
codegen_flags: <defaults>
</compile_context>

<pallas_src>
import numpy as np
import jax
import jax.numpy as jnp
from jax.experimental import pallas as pl
from jax.experimental.pallas import tpu as pltpu

# ----------------------------- BasicBlock hyper-parameters ------------------
IN_CHANNELS = 4
OUT_CHANNELS = 8
KERNEL_SIZE = 3
STRIDE = 2
GROUPS = 1
DOWNSAMPLE = True
USE_BN = True
USE_DO = False        # eval-mode dropout == identity
IS_FIRST_BLOCK = False
BN_EPS = 1e-5

BATCH = 2
LENGTH = 16

LANE = 128                                   # lane-tile width for slab alignment
MXU_PRECISION = jax.lax.Precision.HIGHEST    # keep f32 contractions f32-exact


# ----------------------------- selector builders (host, one-time) -----------
def conv_tap_selectors(l_in, k, stride):
    """sel[t][l, lo] = 1  iff  SAME-padded index lo*stride+t maps to real l."""
    out_dim = (l_in + stride - 1) // stride
    p = max(0, (out_dim - 1) * stride + k - l_in)
    pad_left = p // 2
    sels = np.zeros((k, l_in, out_dim), np.float32)
    for t in range(k):
        for lo in range(out_dim):
            l = lo * stride + t - pad_left
            if 0 <= l < l_in:
                sels[t, l, lo] = 1.0
    return sels, out_dim


def pool_tap_selectors(l_in, pool_k):
    """MyMaxPool1dPadSame: padding computed with stride=1, pool stride==kernel.
    The torch module pads with ZEROS (F.pad constant 0), so zero-valued
    selector columns reproduce its boundary semantics exactly (and for
    L=16, k=2 no padded position is actually read)."""
    p = max(0, (l_in - 1) + pool_k - l_in)
    pad_left = p // 2
    l_pad = l_in + p
    out_dim = (l_pad - pool_k) // pool_k + 1
    sels = np.zeros((pool_k, l_in, out_dim), np.float32)
    for t in range(pool_k):
        for lo in range(out_dim):
            l = lo * pool_k + t - pad_left
            if 0 <= l < l_in:
                sels[t, l, lo] = 1.0
    return sels, out_dim


# ----------------------------- Pallas kernel ---------------------------------
def _make_kernel(*, L, Lout, K, BCin, BCout, pool_k, center_tap, n_noncenter,
                 o_sel1, o_pool, o_w1, o_sel2, o_wcat, o_vec):
    f32 = jnp.float32

    def dot(a, b):
        return jnp.dot(a, b, preferred_element_type=f32, precision=MXU_PRECISION)

    def kernel(x_ref, c_ref, out_ref):
        x = x_ref[...]                                    # (B*Cin, L)

        # ---- bn1 (host-folded affine) + relu1 (dropout = identity in eval) --
        if not IS_FIRST_BLOCK:
            h = x
            if USE_BN:
                h = (h * c_ref[:BCin, o_vec + 0:o_vec + 1]
                     + c_ref[:BCin, o_vec + 1:o_vec + 2])
            h = jnp.maximum(h, 0.0)
        else:
            h = x

        # ---- identity branch: SAME max-pool, ONE wide selector matmul -------
        pool = dot(x, c_ref[:L, o_pool:o_pool + pool_k * Lout])   # (BCin, pool_k*Lout)
        idp = pool[:, :Lout]
        for t in range(1, pool_k):                        # static lane slices + max (VPU)
            idp = jnp.maximum(idp, pool[:, t * Lout:(t + 1) * Lout])

        # ---- conv1 (+ bn2 folded): ONE wide tap-gather matmul + contraction -
        taps = dot(h, c_ref[:L, o_sel1:o_sel1 + K * Lout])        # (BCin, K*Lout)
        g1 = jnp.concatenate(
            [taps[:, t * Lout:(t + 1) * Lout] for t in range(K)], axis=0)  # (K*BCin, Lout)
        h2 = jnp.maximum(                                          # relu2
            dot(c_ref[:BCout, o_w1:o_w1 + K * BCin], g1)
            + c_ref[:BCout, o_vec + 2:o_vec + 3], 0.0)             # (BCout, Lout)

        # ---- conv2 non-center taps: ONE selector matmul + lane slices -------
        if n_noncenter > 0:
            sh = dot(h2, c_ref[:Lout, o_sel2:o_sel2 + n_noncenter * Lout])

        # ---- conv2 + channel-padded residual add: ONE fused contraction -----
        parts, s_i = [], 0
        for t in range(K):
            if t == center_tap:                           # stride-1 identity tap
                parts.append(h2)
            else:
                parts.append(sh[:, s_i * Lout:(s_i + 1) * Lout])
                s_i += 1
        parts.append(idp)                                 # residual via cpad cols
        gcat = jnp.concatenate(parts, axis=0)             # (K*BCout + BCin, Lout)
        out = (dot(c_ref[:BCout, o_wcat:o_wcat + K * BCout + BCin], gcat)
               + c_ref[:BCout, o_vec + 3:o_vec + 4])
        out_ref[...] = out.astype(out_ref.dtype)          # single store

    return kernel


# ----------------------------- one-time prep + wrapper -----------------------
def make_basic_block_fn(params):
    """Fold BN stats, pack all constants into ONE lane-aligned slab, return x->out."""
    B, Cin, Cout, K, L = BATCH, IN_CHANNELS, OUT_CHANNELS, KERNEL_SIZE, LENGTH
    assert GROUPS == 1  # TODO(synk): grouped conv (groups > 1) not implemented
    eff_stride = STRIDE if DOWNSAMPLE else 1
    BCin, BCout = B * Cin, B * Cout

    p = {k: np.asarray(v, np.float32) for k, v in params.items()}

    sel1, Lout = conv_tap_selectors(L, K, eff_stride)       # (K, L, Lout)
    sel2, Lout2 = conv_tap_selectors(Lout, K, 1)             # (K, Lout, Lout)
    assert Lout2 == Lout
    if DOWNSAMPLE:
        psel, pool_out = pool_tap_selectors(L, eff_stride)
    else:
        psel, pool_out = np.eye(L, dtype=np.float32)[None], L
    assert pool_out == Lout, "residual lengths must match"
    pool_k = psel.shape[0]

    # conv2's center (identity) tap needs no gather
    eye = np.eye(Lout, dtype=np.float32)
    center_tap, noncenter = -1, []
    for t in range(K):
        if center_tap < 0 and np.array_equal(sel2[t], eye):
            center_tap = t
        else:
            noncenter.append(sel2[t])
    n_noncenter = len(noncenter)

    # fold BN (inference running stats are compile-time constants)
    if USE_BN:
        s1 = p['g1'] / np.sqrt(p['v1'] + BN_EPS)
        sh1 = p['be1'] - p['m1'] * s1
        s2v = p['g2'] / np.sqrt(p['v2'] + BN_EPS)
        w1f = p['w1'] * s2v[:, None, None]                   # bn2 -> conv1 weight
        b1f = s2v * (p['b1'] - p['m2']) + p['be2']           # bn2 -> conv1 bias
    else:
        s1, sh1 = np.ones(Cin, np.float32), np.zeros(Cin, np.float32)
        w1f, b1f = p['w1'], p['b1']

    # per-batch block-diagonal contraction weights (tap-major columns)
    W1_big = np.zeros((BCout, K * BCin), np.float32)
    W2_big = np.zeros((BCout, K * BCout), np.float32)
    for t in range(K):
        for b in range(B):
            W1_big[b*Cout:(b+1)*Cout, t*BCin + b*Cin: t*BCin + (b+1)*Cin] = w1f[:, :, t]
            W2_big[b*Cout:(b+1)*Cout, t*BCout + b*Cout: t*BCout + (b+1)*Cout] = p['w2'][:, :, t]

    # residual channel zero-pad fused into the conv2 contraction
    ch1 = (Cout - Cin) // 2
    cpad = np.zeros((BCout, BCin), np.float32)
    for b in range(B):
        for ci in range(Cin):
            cpad[b * Cout + ch1 + ci, b * Cin + ci] = 1.0
    Wcat = np.concatenate([W2_big, cpad], axis=1)            # (BCout, K*BCout+BCin)

    # batch-tiled per-row affine / bias vectors as 4 columns
    vec = np.zeros((max(BCin, BCout), 4), np.float32)
    vec[:BCin, 0] = np.tile(s1, B)          # bn1 scale
    vec[:BCin, 1] = np.tile(sh1, B)         # bn1 shift
    vec[:BCout, 2] = np.tile(b1f, B)        # conv1 (+bn2) bias
    vec[:BCout, 3] = np.tile(p['b2'], B)    # conv2 bias

    # wide per-stage selector blocks (one matmul per stage instead of per tap)
    sel1cat = np.concatenate([sel1[t] for t in range(K)], axis=1)       # (L, K*Lout)
    poolcat = np.concatenate([psel[t] for t in range(pool_k)], axis=1)  # (L, pool_k*Lout)
    sel2cat = (np.concatenate(noncenter, axis=1) if noncenter
               else np.zeros((Lout, Lout), np.float32))                 # (Lout, n_nc*Lout)

    # Pack EVERYTHING into ONE slab: one constant DMA, every sub-block starts
    # on a 128-lane boundary (relayout-free matmul operands), width a multiple
    # of 128, rows padded to a multiple of 8.
    blocks = [sel1cat, poolcat, W1_big, sel2cat, Wcat, vec]
    n_rows = -(-max(blk.shape[0] for blk in blocks) // 8) * 8
    offs, col = [], 0
    for blk in blocks:
        offs.append(col)
        col += blk.shape[1]
        col = -(-col // LANE) * LANE
    cslab = np.zeros((n_rows, col), np.float32)
    for off, blk in zip(offs, blocks):
        cslab[:blk.shape[0], off:off + blk.shape[1]] = blk
    o_sel1, o_pool, o_w1, o_sel2, o_wcat, o_vec = offs

    kernel = _make_kernel(L=L, Lout=Lout, K=K, BCin=BCin, BCout=BCout,
                          pool_k=pool_k, center_tap=center_tap,
                          n_noncenter=n_noncenter,
                          o_sel1=o_sel1, o_pool=o_pool, o_w1=o_w1,
                          o_sel2=o_sel2, o_wcat=o_wcat, o_vec=o_vec)

    vmem = pl.BlockSpec(memory_space=pltpu.MemorySpace.VMEM)
    # No grid: the whole problem is one tiny program (a grid here is pure
    # per-step overhead).  At realistic lengths: tile Lout on a grid axis with
    # dimension_semantics=("parallel",) so both of v7x's TensorCores get work,
    # keep the output tile a multiple of 128 lanes (lane-dense stores), and
    # size tiles for v7x's 64 MiB physical / 32 MiB scoped VMEM including the
    # 2x input double-buffering.
    call = pl.pallas_call(
        kernel,
        out_shape=jax.ShapeDtypeStruct((BCout, Lout), jnp.float32),
        in_specs=[vmem, vmem],
        out_specs=vmem,
    )

    cslab_j = jnp.asarray(cslab)

    @jax.jit
    def fwd(x):
        x2d = x.reshape(BCin, L)            # batch -> sublanes (pure reshape)
        out = call(x2d, cslab_j)            # ONE kernel call: x DMA + const DMA
        return out.reshape(B, Cout, Lout)   # pure reshape back
    return fwd


# ----------------------------- deterministic params --------------------------
def init_params(key):
    ks = jax.random.split(key, 12)
    return dict(
        w1=0.3 * jax.random.normal(ks[0], (OUT_CHANNELS, IN_CHANNELS // GROUPS, KERNEL_SIZE), jnp.float32),
        b1=0.1 * jax.random.normal(ks[1], (OUT_CHANNELS,), jnp.float32),
        w2=0.3 * jax.random.normal(ks[2], (OUT_CHANNELS, OUT_CHANNELS // GROUPS, KERNEL_SIZE), jnp.float32),
        b2=0.1 * jax.random.normal(ks[3], (OUT_CHANNELS,), jnp.float32),
        g1=1.0 + 0.1 * jax.random.normal(ks[4], (IN_CHANNELS,), jnp.float32),
        be1=0.1 * jax.random.normal(ks[5], (IN_CHANNELS,), jnp.float32),
        m1=0.1 * jax.random.normal(ks[6], (IN_CHANNELS,), jnp.float32),
        v1=jax.random.uniform(ks[7], (IN_CHANNELS,), jnp.float32, 0.5, 1.5),
        g2=1.0 + 0.1 * jax.random.normal(ks[8], (OUT_CHANNELS,), jnp.float32),
        be2=0.1 * jax.random.normal(ks[9], (OUT_CHANNELS,), jnp.float32),
        m2=0.1 * jax.random.normal(ks[10], (OUT_CHANNELS,), jnp.float32),
        v2=jax.random.uniform(ks[11], (OUT_CHANNELS,), jnp.float32, 0.5, 1.5),
    )


# ----------------------------- independent numpy reference -------------------
def _np_conv1d_same(x, w, b, stride):
    B, Cin, L = x.shape
    Cout, _, K = w.shape
    out_dim = (L + stride - 1) // stride
    p = max(0, (out_dim - 1) * stride + K - L)
    pl_, pr = p // 2, p - p // 2
    xp = np.pad(x, ((0, 0), (0, 0), (pl_, pr)))
    y = np.zeros((B, Cout, out_dim), np.float32)
    for lo in range(out_dim):
        seg = xp[:, :, lo * stride: lo * stride + K]
        y[:, :, lo] = np.einsum('bck,ock->bo', seg, w) + b
    return y


def _np_maxpool1d_same(x, k):
    B, C, L = x.shape
    p = max(0, (L - 1) + k - L)
    pl_, pr = p // 2, p - p // 2
    xp = np.pad(x, ((0, 0), (0, 0), (pl_, pr)))
    out_dim = (xp.shape[-1] - k) // k + 1
    y = np.zeros((B, C, out_dim), np.float32)
    for lo in range(out_dim):
        y[:, :, lo] = xp[:, :, lo * k: lo * k + k].max(axis=-1)
    return y


def ref_forward(x, p):
    x = np.asarray(x, np.float32)
    p = {k: np.asarray(v, np.float32) for k, v in p.items()}
    out = x
    if not IS_FIRST_BLOCK:
        if USE_BN:
            out = (out - p['m1'][None, :, None]) / np.sqrt(p['v1'][None, :, None] + BN_EPS) \
                  * p['g1'][None, :, None] + p['be1'][None, :, None]
        out = np.maximum(out, 0.0)
    eff_stride = STRIDE if DOWNSAMPLE else 1
    out = _np_conv1d_same(out, p['w1'], p['b1'], eff_stride)
    if USE_BN:
        out = (out - p['m2'][None, :, None]) / np.sqrt(p['v2'][None, :, None] + BN_EPS) \
              * p['g2'][None, :, None] + p['be2'][None, :, None]
    out = np.maximum(out, 0.0)
    out = _np_conv1d_same(out, p['w2'], p['b2'], 1)
    identity = x
    if DOWNSAMPLE:
        identity = _np_maxpool1d_same(identity, eff_stride)
    if OUT_CHANNELS != IN_CHANNELS:
        ch1 = (OUT_CHANNELS - IN_CHANNELS) // 2
        ch2 = OUT_CHANNELS - IN_CHANNELS - ch1
        identity = np.pad(identity, ((0, 0), (ch1, ch2), (0, 0)))
    return out + identity


# ----------------------------- main ------------------------------------------
if __name__ == "__main__":
    key = jax.random.PRNGKey(0)
    k_x, k_p = jax.random.split(key)
    x = jax.random.normal(k_x, (BATCH, IN_CHANNELS, LENGTH), jnp.float32)
    params = init_params(k_p)

    fwd = make_basic_block_fn(params)          # one-time host-side prep
    out = jax.block_until_ready(fwd(x))

    ref = ref_forward(np.asarray(x), params)
    assert out.shape == ref.shape, (out.shape, ref.shape)
    # Exact 0/1 selector gathers + HIGHEST-precision f32 contractions -> tight
    # tolerance (tightened from 5e-2 per review).
    if not np.allclose(np.asarray(out), ref, rtol=1e-4, atol=1e-4):
        err = float(np.abs(np.asarray(out) - ref).max())
        raise AssertionError(f"Pallas kernel mismatch, max abs err = {err}")
    print("KERNEL_OK")
</pallas_src>

<mosaic_0001>
module attributes {stable_mosaic.version = 11 : i64} {
  func.func @kernel(%arg0: memref<8x16xf32, #tpu.memory_space<vmem>>, %arg1: memref<16x768xf32, #tpu.memory_space<vmem>>, %arg2: memref<16x8xf32, #tpu.memory_space<vmem>>) attributes {dimension_semantics = [], scalar_prefetch = 0 : i64, scratch_operands = 0 : i64, tpu.core_type = #tpu.core_type<tc>} {
    %c0 = arith.constant 0 : index
    %c0_0 = arith.constant 0 : index
    %0 = vector.load %arg0[%c0, %c0_0] : memref<8x16xf32, #tpu.memory_space<vmem>>, vector<8x16xf32>
    %c0_1 = arith.constant 0 : index
    %c640 = arith.constant 640 : index
    %1 = vector.load %arg1[%c0_1, %c640] : memref<16x768xf32, #tpu.memory_space<vmem>>, vector<8x1xf32>
    %2 = vector.broadcast %1 : vector<8x1xf32> to vector<8x16xf32>
    %3 = arith.mulf %0, %2 : vector<8x16xf32>
    %c0_2 = arith.constant 0 : index
    %c641 = arith.constant 641 : index
    %4 = vector.load %arg1[%c0_2, %c641] : memref<16x768xf32, #tpu.memory_space<vmem>>, vector<8x1xf32>
    %5 = vector.broadcast %4 : vector<8x1xf32> to vector<8x16xf32>
    %6 = arith.addf %3, %5 : vector<8x16xf32>
    %cst = arith.constant 0.000000e+00 : f32
    %7 = vector.broadcast %cst : f32 to vector<8x16xf32>
    %8 = arith.maximumf %6, %7 : vector<8x16xf32>
    %c0_3 = arith.constant 0 : index
    %c128 = arith.constant 128 : index
    %9 = vector.load %arg1[%c0_3, %c128] : memref<16x768xf32, #tpu.memory_space<vmem>>, vector<16x16xf32>
    %cst_4 = arith.constant dense<0.000000e+00> : vector<8x16xf32>
    %10 = tpu.matmul %0, %9, %cst_4 {dimension_numbers = #tpu.dot_dimension_numbers<[1], [0], [0], [1], [0, 0, 1, 1], [], []>, precision = #tpu.contract_precision<fp32>} : vector<8x16xf32>, vector<16x16xf32>, vector<8x16xf32> -> vector<8x16xf32>
    %11 = vector.extract_strided_slice %10 {offsets = [0, 0], sizes = [8, 8], strides = [1, 1]} : vector<8x16xf32> to vector<8x8xf32>
    %12 = vector.extract_strided_slice %10 {offsets = [0, 8], sizes = [8, 8], strides = [1, 1]} : vector<8x16xf32> to vector<8x8xf32>
    %13 = arith.maximumf %11, %12 : vector<8x8xf32>
    %c0_5 = arith.constant 0 : index
    %c0_6 = arith.constant 0 : index
    %14 = vector.load %arg1[%c0_5, %c0_6] : memref<16x768xf32, #tpu.memory_space<vmem>>, vector<16x24xf32>
    %cst_7 = arith.constant dense<0.000000e+00> : vector<8x24xf32>
    %15 = tpu.matmul %8, %14, %cst_7 {dimension_numbers = #tpu.dot_dimension_numbers<[1], [0], [0], [1], [0, 0, 1, 1], [], []>, precision = #tpu.contract_precision<fp32>} : vector<8x16xf32>, vector<16x24xf32>, vector<8x24xf32> -> vector<8x24xf32>
    %16 = vector.extract_strided_slice %15 {offsets = [0, 0], sizes = [8, 8], strides = [1, 1]} : vector<8x24xf32> to vector<8x8xf32>
    %17 = vector.extract_strided_slice %15 {offsets = [0, 8], sizes = [8, 8], strides = [1, 1]} : vector<8x24xf32> to vector<8x8xf32>
    %18 = vector.extract_strided_slice %15 {offsets = [0, 16], sizes = [8, 8], strides = [1, 1]} : vector<8x24xf32> to vector<8x8xf32>
    %19 = tpu.concatenate %16, %17, %18 in 0 : vector<8x8xf32>, vector<8x8xf32>, vector<8x8xf32> -> vector<24x8xf32>
    %c0_8 = arith.constant 0 : index
    %c256 = arith.constant 256 : index
    %20 = vector.load %arg1[%c0_8, %c256] : memref<16x768xf32, #tpu.memory_space<vmem>>, vector<16x24xf32>
    %cst_9 = arith.constant dense<0.000000e+00> : vector<16x8xf32>
    %21 = tpu.matmul %20, %19, %cst_9 {dimension_numbers = #tpu.dot_dimension_numbers<[1], [0], [0], [1], [0, 0, 1, 1], [], []>, precision = #tpu.contract_precision<fp32>} : vector<16x24xf32>, vector<24x8xf32>, vector<16x8xf32> -> vector<16x8xf32>
    %c0_10 = arith.constant 0 : index
    %c642 = arith.constant 642 : index
    %22 = vector.load %arg1[%c0_10, %c642] : memref<16x768xf32, #tpu.memory_space<vmem>>, vector<16x1xf32>
    %23 = vector.broadcast %22 : vector<16x1xf32> to vector<16x8xf32>
    %24 = arith.addf %21, %23 : vector<16x8xf32>
    %cst_11 = arith.constant 0.000000e+00 : f32
    %25 = vector.broadcast %cst_11 : f32 to vector<16x8xf32>
    %26 = arith.maximumf %24, %25 : vector<16x8xf32>
    %c0_12 = arith.constant 0 : index
    %c384 = arith.constant 384 : index
    %27 = vector.load %arg1[%c0_12, %c384] : memref<16x768xf32, #tpu.memory_space<vmem>>, vector<8x16xf32>
    %cst_13 = arith.constant dense<0.000000e+00> : vector<16x16xf32>
    %28 = tpu.matmul %26, %27, %cst_13 {dimension_numbers = #tpu.dot_dimension_numbers<[1], [0], [0], [1], [0, 0, 1, 1], [], []>, precision = #tpu.contract_precision<fp32>} : vector<16x8xf32>, vector<8x16xf32>, vector<16x16xf32> -> vector<16x16xf32>
    %29 = vector.extract_strided_slice %28 {offsets = [0, 0], sizes = [16, 8], strides = [1, 1]} : vector<16x16xf32> to vector<16x8xf32>
    %30 = vector.extract_strided_slice %28 {offsets = [0, 8], sizes = [16, 8], strides = [1, 1]} : vector<16x16xf32> to vector<16x8xf32>
    %31 = tpu.concatenate %29, %26, %30, %13 in 0 : vector<16x8xf32>, vector<16x8xf32>, vector<16x8xf32>, vector<8x8xf32> -> vector<56x8xf32>
    %c0_14 = arith.constant 0 : index
    %c512 = arith.constant 512 : index
    %32 = vector.load %arg1[%c0_14, %c512] : memref<16x768xf32, #tpu.memory_space<vmem>>, vector<16x56xf32>
    %cst_15 = arith.constant dense<0.000000e+00> : vector<16x8xf32>
    %33 = tpu.matmul %32, %31, %cst_15 {dimension_numbers = #tpu.dot_dimension_numbers<[1], [0], [0], [1], [0, 0, 1, 1], [], []>, precision = #tpu.contract_precision<fp32>} : vector<16x56xf32>, vector<56x8xf32>, vector<16x8xf32> -> vector<16x8xf32>
    %c0_16 = arith.constant 0 : index
    %c643 = arith.constant 643 : index
    %34 = vector.load %arg1[%c0_16, %c643] : memref<16x768xf32, #tpu.memory_space<vmem>>, vector<16x1xf32>
    %35 = vector.broadcast %34 : vector<16x1xf32> to vector<16x8xf32>
    %36 = arith.addf %33, %35 : vector<16x8xf32>
    %c0_17 = arith.constant 0 : index
    %c0_18 = arith.constant 0 : index
    %37 = vector.load %arg2[%c0_17, %c0_18] : memref<16x8xf32, #tpu.memory_space<vmem>>, vector<16x8xf32>
    tpu.vector_store %arg2[%c0_17, %c0_18], %36 {strides = array<i32>} : memref<16x8xf32, #tpu.memory_space<vmem>>, vector<16x8xf32>,
    return
  }
}

</mosaic_0001>

<llo_original>
// kernel: fwd.1
$region0: #{fwd.1}
  #allocation0 [shape = 'u32[]', space=smem, size = 0x4, offset = 0x4, fixed_abs, tag = 'smem constant byte address 0x4 - core index']
  #allocation1 [shape = 'u32[144,128]{1,0:T(1,128)}', space=vmem, size = 0x12000, scoped, tag = 'internal scratch']
  %s0 = inlined_call_operand.hbm [shape: f32[8,16], index: 0, kind: input, shape index: {}]
  %s1 = inlined_call_operand.hbm [shape: f32[16,768], index: 1, kind: input, shape index: {}]
  %s2 = inlined_call_operand.hbm [shape: f32[16,8], index: 2, kind: output, shape index: {}]
  %s3 = sld [smem:[#allocation0]]
  $region26: #{fwd.1} parent=0
    _
  %s5 = ssub.s32 1, %s3
  %s6 = scalar_select 0, %s5, %s3
  $region1: #{fwd.1} parent=0
    #allocation2 [shape = 'u8[4096]{0}', space=vmem, size = 0x1000, scoped, tag = 'input window, operand 0, single buffered']
    #allocation3 [shape = 's32[1]{0}', space=sflag, size = 0x4, scoped, tag = 'scoped memory for fwd.1']
    #allocation4 [shape = 's32[1]{0}', space=sflag, size = 0x4, scoped, tag = 'scoped memory for fwd.1']
    #allocation5 [shape = 'u8[49152]{0}', space=vmem, size = 0xc000, scoped, tag = 'input window, operand 1, single buffered']
    #allocation6 [shape = 's32[1]{0}', space=sflag, size = 0x4, scoped, tag = 'scoped memory for fwd.1']
    #allocation7 [shape = 'u8[8192]{0}', space=vmem, size = 0x2000, scoped, tag = 'output window, operand 0, single buffered']
    %7 = vsyncpa [#allocation3], 0
    %8 = vsyncpa [#allocation6], 0
    %9 = vsyncpa [#allocation4], 0
    // Predicated region
    $region2: #{fwd.1} parent=1 // pred_check
      _
    $region3: #{fwd.1} parent=1 // pred_check_branch
      %11 = sbr.rel (0) target = $region5
    $region4: #{fwd.1} parent=1 // pred_region
      %s13 = ssub.s32 128, 128
      %14 = vsyncadd [#allocation3], %s13
      %s16 = sshll.u32 [#allocation2], 4
      %s17 = int_to_ptr.vmem [resolvable:$true] %s16
      %19 = dma.hbm_to_vmem [thread:$0]  %s0, 128, %s17, [#allocation3]
    $region5: #{fwd.1} parent=1 // pred_fallthru
      _
    // Predicated region
    $region6: #{fwd.1} parent=1 // pred_check
      _
    $region7: #{fwd.1} parent=1 // pred_check_branch
      %21 = sbr.rel (0) target = $region9
    $region8: #{fwd.1} parent=1 // pred_region
      %s23 = ssub.s32 1536, 1536
      %24 = vsyncadd [#allocation6], %s23
      %s25 = sshll.u32 [#allocation5], 4
      %s26 = int_to_ptr.vmem [resolvable:$true] %s25
      %31 = dma.hbm_to_vmem [thread:$0]  %s1, 1536, %s26, [#allocation6], 768, 768, 48
    $region9: #{fwd.1} parent=1 // pred_fallthru
      _
    // Predicated region
    $region10: #{fwd.1} parent=1 // pred_check
      _
    $region11: #{fwd.1} parent=1 // pred_check_branch
      %33 = sbr.rel (0) target = $region13
    $region12: #{fwd.1} parent=1 // pred_region
      %34 = dma.done [#allocation3], 128
    $region13: #{fwd.1} parent=1 // pred_fallthru
      _
    // Predicated region
    $region14: #{fwd.1} parent=1 // pred_check
      _
    $region15: #{fwd.1} parent=1 // pred_check_branch
      %36 = sbr.rel (0) target = $region17
    $region16: #{fwd.1} parent=1 // pred_region
      %37 = dma.done [#allocation6], 1536
    $region17: #{fwd.1} parent=1 // pred_fallthru
      _
    %v38 = vld [vmem:[#allocation2] sm:$0xff]
    %v39 = vld [vmem:[#allocation5 + $0x28] sm:$0xff]
    %41 = vset.pattern.permute.xlu0 0
    %42 = vperm.xlu0 %41, %v39
    %v43 = vpop.permute.xlu0 %42
    %v45 = vmul.f32 %v38, %v43
    %46 = vset.pattern.permute.xlu0 1
    %47 = vperm.xlu0 %46, %v39
    %v48 = vpop.permute.xlu0 %47
    %v50 = vadd.f32 %v45, %v48
    %v51 = vmax.f32 %v50, 0.0
    %v52 = vld [vmem:[#allocation5 + $0x8] sm:$0xff]
    %v53 = vld [vmem:[#allocation5 + $0x38] sm:$0xff]
    %vm54 = vcmask 130048
    %v56 = vsel %vm54, %v38, 0
    %58 = vmatprep.subr.mxu0 0.0
    %v59 = vand.u32 %v52, 4294901760
    %60 = vmatpush1.msra.mxu0 %v59
    %61 = vmatprep.subr.mxu0 0.0
    %v62 = vand.u32 %v53, 4294901760
    %63 = vmatpush1.msra.mxu0 %v62
    %64 = vmatprep.subr.mxu0 0.0
    %65 = vmatpush1.msra.mxu0 0.0
    %66 = vmatprep.subr.mxu0 0.0
    %67 = vmatpush1.msra.mxu0 0.0
    %68 = vmatprep.subr.mxu0 0.0
    %69 = vmatpush1.msra.mxu0 0.0
    %70 = vmatprep.subr.mxu0 0.0
    %71 = vmatpush1.msra.mxu0 0.0
    %72 = vmatprep.subr.mxu0 0.0
    %73 = vmatpush1.msra.mxu0 0.0
    %74 = vmatprep.subr.mxu0 0.0
    %75 = vmatpush1.msra.mxu0 0.0
    %76 = vmatprep.subr.mxu0 0.0
    %77 = vmatpush1.msra.mxu0 0.0
    %78 = vmatprep.subr.mxu0 0.0
    %79 = vmatpush1.msra.mxu0 0.0
    %80 = vmatprep.subr.mxu0 0.0
    %81 = vmatpush1.msra.mxu0 0.0
    %82 = vmatprep.subr.mxu0 0.0
    %83 = vmatpush1.msra.mxu0 0.0
    %84 = vmatprep.subr.mxu0 0.0
    %85 = vmatpush1.msra.mxu0 0.0
    %86 = vmatprep.subr.mxu0 0.0
    %87 = vmatpush1.msra.mxu0 0.0
    %88 = vmatprep.subr.mxu0 0.0
    %89 = vmatpush1.msra.mxu0 0.0
    %90 = vmatprep.subr.mxu0 0.0
    %91 = vmatpush1.msra.mxu0 0.0
    %92 = vmatprep.subr.mxu0 0.0
    %93 = vmatpush1.msra.mxu0 0.0
    %94 = vmatprep.subr.mxu0 0.0
    %95 = vmatpush1.msra.mxu0 0.0
    %96 = vmatprep.subr.mxu0 0.0
    %97 = vmatpush1.msra.mxu0 0.0
    %98 = vmatprep.subr.mxu0 0.0
    %99 = vmatpush1.msra.mxu0 0.0
    %100 = vmatprep.subr.mxu0 0.0
    %101 = vmatpush1.msra.mxu0 0.0
    %102 = vmatprep.subr.mxu0 0.0
    %103 = vmatpush1.msra.mxu0 0.0
    %104 = vmatprep.subr.mxu0 0.0
    %105 = vmatpush1.msra.mxu0 0.0
    %106 = vmatprep.subr.mxu0 0.0
    %107 = vmatpush1.msra.mxu0 0.0
    %108 = vmatprep.subr.mxu0 0.0
    %109 = vmatpush1.msra.mxu0 0.0
    %110 = vmatprep.subr.mxu0 0.0
    %111 = vmatpush1.msra.mxu0 0.0
    %112 = vmatprep.subr.mxu0 0.0
    %113 = vmatpush1.msra.mxu0 0.0
    %114 = vmatprep.subr.mxu0 0.0
    %115 = vmatpush1.msra.mxu0 0.0
    %116 = vmatprep.subr.mxu0 0.0
    %117 = vmatpush1.msra.mxu0 0.0
    %118 = vmatprep.subr.mxu0 0.0
    %119 = vmatpush1.msra.mxu0 0.0
    %120 = vmatprep.subr.mxu0 0.0
    %121 = vmatpush1.msra.mxu0 0.0
    %122 = vmatprep.subr.mxu0 0.0
    %123 = vmatpush1.msra.mxu0 0.0
    %124 = vmatprep.mubr.f32.mxu0 0.0
    %v125 = vand.u32 %v56, 4294901760
    %v126 = vsub.f32 %v56, %v125
    %v127 = vand.u32 %v126, 4294901760
    %v128 = vsub.f32 %v126, %v127
    %v129 = vand.u32 %v128, 4294901760
    %130 = vmatmul.mubr.f32.gmra.mrb[0].mxu0 %v129
    %v131 = vpop.f32.mrb[0].mxu0
    %v132 = vadd.f32 0.0, %v131
    %v133 = vpop.f32.mrb[0].mxu0
    %134 = vdwg.mxu0
    %135 = vmatprep.subr.mxu0 0.0
    %v136 = vand.u32 %v52, 4294901760
    %v137 = vsub.f32 %v52, %v136
    %v138 = vand.u32 %v137, 4294901760
    %v139 = vsub.f32 %v137, %v138
    %v140 = vand.u32 %v139, 4294901760
    %141 = vmatpush1.msra.mxu0 %v140
    %142 = vmatprep.subr.mxu0 0.0
    %v143 = vand.u32 %v53, 4294901760
    %v144 = vsub.f32 %v53, %v143
    %v145 = vand.u32 %v144, 4294901760
    %v146 = vsub.f32 %v144, %v145
    %v147 = vand.u32 %v146, 4294901760
    %148 = vmatpush1.msra.mxu0 %v147
    %149 = vmatprep.subr.mxu0 0.0
    %150 = vmatpush1.msra.mxu0 0.0
    %151 = vmatprep.subr.mxu0 0.0
    %152 = vmatpush1.msra.mxu0 0.0
    %153 = vmatprep.subr.mxu0 0.0
    %154 = vmatpush1.msra.mxu0 0.0
    %155 = vmatprep.subr.mxu0 0.0
    %156 = vmatpush1.msra.mxu0 0.0
    %157 = vmatprep.subr.mxu0 0.0
    %158 = vmatpush1.msra.mxu0 0.0
    %159 = vmatprep.subr.mxu0 0.0
    %160 = vmatpush1.msra.mxu0 0.0
    %161 = vmatprep.subr.mxu0 0.0
    %162 = vmatpush1.msra.mxu0 0.0
    %163 = vmatprep.subr.mxu0 0.0
    %164 = vmatpush1.msra.mxu0 0.0
    %165 = vmatprep.subr.mxu0 0.0
    %166 = vmatpush1.msra.mxu0 0.0
    %167 = vmatprep.subr.mxu0 0.0
    %168 = vmatpush1.msra.mxu0 0.0
    %169 = vmatprep.subr.mxu0 0.0
    %170 = vmatpush1.msra.mxu0 0.0
    %171 = vmatprep.subr.mxu0 0.0
    %172 = vmatpush1.msra.mxu0 0.0
    %173 = vmatprep.subr.mxu0 0.0
    %174 = vmatpush1.msra.mxu0 0.0
    %175 = vmatprep.subr.mxu0 0.0
    %176 = vmatpush1.msra.mxu0 0.0
    %177 = vmatprep.subr.mxu0 0.0
    %178 = vmatpush1.msra.mxu0 0.0
    %179 = vmatprep.subr.mxu0 0.0
    %180 = vmatpush1.msra.mxu0 0.0
    %181 = vmatprep.subr.mxu0 0.0
    %182 = vmatpush1.msra.mxu0 0.0
    %183 = vmatprep.subr.mxu0 0.0
    %184 = vmatpush1.msra.mxu0 0.0
    %185 = vmatprep.subr.mxu0 0.0
    %186 = vmatpush1.msra.mxu0 0.0
    %187 = vmatprep.subr.mxu0 0.0
    %188 = vmatpush1.msra.mxu0 0.0
    %189 = vmatprep.subr.mxu0 0.0
    %190 = vmatpush1.msra.mxu0 0.0
    %191 = vmatprep.subr.mxu0 0.0
    %192 = vmatpush1.msra.mxu0 0.0
    %193 = vmatprep.subr.mxu0 0.0
    %194 = vmatpush1.msra.mxu0 0.0
    %195 = vmatprep.subr.mxu0 0.0
    %196 = vmatpush1.msra.mxu0 0.0
    %197 = vmatprep.subr.mxu0 0.0
    %198 = vmatpush1.msra.mxu0 0.0
    %199 = vmatprep.subr.mxu0 0.0
    %200 = vmatpush1.msra.mxu0 0.0
    %201 = vmatprep.subr.mxu0 0.0
    %202 = vmatpush1.msra.mxu0 0.0
    %203 = vmatprep.subr.mxu0 0.0
    %204 = vmatpush1.msra.mxu0 0.0
    %205 = vmatprep.subr.mxu0 0.0
    %206 = vmatpush1.msra.mxu0 0.0
    %207 = vmatprep.subr.mxu0 0.0
    %208 = vmatpush1.msra.mxu0 0.0
    %209 = vmatprep.mubr.f32.mxu0 0.0
    %v210 = vand.u32 %v56, 4294901760
    %211 = vmatmul.mubr.f32.gmra.mrb[0].mxu0 %v210
    %v212 = vpop.f32.mrb[0].mxu0
    %v213 = vadd.f32 %v132, %v212
    %v214 = vpop.f32.mrb[0].mxu0
    %215 = vdwg.mxu0
    %216 = vmatprep.subr.mxu0 0.0
    %v217 = vand.u32 %v52, 4294901760
    %v218 = vsub.f32 %v52, %v217
    %219 = vmatpush1.msra.mxu0 %v218
    %220 = vmatprep.subr.mxu0 0.0
    %v221 = vand.u32 %v53, 4294901760
    %v222 = vsub.f32 %v53, %v221
    %223 = vmatpush1.msra.mxu0 %v222
    %224 = vmatprep.subr.mxu0 0.0
    %225 = vmatpush1.msra.mxu0 0.0
    %226 = vmatprep.subr.mxu0 0.0
    %227 = vmatpush1.msra.mxu0 0.0
    %228 = vmatprep.subr.mxu0 0.0
    %229 = vmatpush1.msra.mxu0 0.0
    %230 = vmatprep.subr.mxu0 0.0
    %231 = vmatpush1.msra.mxu0 0.0
    %232 = vmatprep.subr.mxu0 0.0
    %233 = vmatpush1.msra.mxu0 0.0
    %234 = vmatprep.subr.mxu0 0.0
    %235 = vmatpush1.msra.mxu0 0.0
    %236 = vmatprep.subr.mxu0 0.0
    %237 = vmatpush1.msra.mxu0 0.0
    %238 = vmatprep.subr.mxu0 0.0
    %239 = vmatpush1.msra.mxu0 0.0
    %240 = vmatprep.subr.mxu0 0.0
    %241 = vmatpush1.msra.mxu0 0.0
    %242 = vmatprep.subr.mxu0 0.0
    %243 = vmatpush1.msra.mxu0 0.0
    %244 = vmatprep.subr.mxu0 0.0
    %245 = vmatpush1.msra.mxu0 0.0
    %246 = vmatprep.subr.mxu0 0.0
    %247 = vmatpush1.msra.mxu0 0.0
    %248 = vmatprep.subr.mxu0 0.0
    %249 = vmatpush1.msra.mxu0 0.0
    %250 = vmatprep.subr.mxu0 0.0
    %251 = vmatpush1.msra.mxu0 0.0
    %252 = vmatprep.subr.mxu0 0.0
    %253 = vmatpush1.msra.mxu0 0.0
    %254 = vmatprep.subr.mxu0 0.0
    %255 = vmatpush1.msra.mxu0 0.0
    %256 = vmatprep.subr.mxu0 0.0
    %257 = vmatpush1.msra.mxu0 0.0
    %258 = vmatprep.subr.mxu0 0.0
    %259 = vmatpush1.msra.mxu0 0.0
    %260 = vmatprep.subr.mxu0 0.0
    %261 = vmatpush1.msra.mxu0 0.0
    %262 = vmatprep.subr.mxu0 0.0
    %263 = vmatpush1.msra.mxu0 0.0
    %264 = vmatprep.subr.mxu0 0.0
    %265 = vmatpush1.msra.mxu0 0.0
    %266 = vmatprep.subr.mxu0 0.0
    %267 = vmatpush1.msra.mxu0 0.0
    %268 = vmatprep.subr.mxu0 0.0
    %269 = vmatpush1.msra.mxu0 0.0
    %270 = vmatprep.subr.mxu0 0.0
    %271 = vmatpush1.msra.mxu0 0.0
    %272 = vmatprep.subr.mxu0 0.0
    %273 = vmatpush1.msra.mxu0 0.0
    %274 = vmatprep.subr.mxu0 0.0
    %275 = vmatpush1.msra.mxu0 0.0
    %276 = vmatprep.subr.mxu0 0.0
    %277 = vmatpush1.msra.mxu0 0.0
    %278 = vmatprep.subr.mxu0 0.0
    %279 = vmatpush1.msra.mxu0 0.0
    %280 = vmatprep.subr.mxu0 0.0
    %281 = vmatpush1.msra.mxu0 0.0
    %282 = vmatprep.subr.mxu0 0.0
    %283 = vmatpush1.msra.mxu0 0.0
    %284 = vmatprep.mubr.f32.mxu0 0.0
    %v285 = vand.u32 %v56, 4294901760
    %v286 = vsub.f32 %v56, %v285
    %287 = vmatmul.mubr.f32.gmra.mrb[0].mxu0 %v286
    %v288 = vpop.f32.mrb[0].mxu0
    %v289 = vadd.f32 %v213, %v288
    %v290 = vpop.f32.mrb[0].mxu0
    %291 = vdwg.mxu0
    %292 = vmatprep.subr.mxu0 0.0
    %v293 = vand.u32 %v52, 4294901760
    %294 = vmatpush1.msra.mxu0 %v293
    %295 = vmatprep.subr.mxu0 0.0
    %v296 = vand.u32 %v53, 4294901760
    %297 = vmatpush1.msra.mxu0 %v296
    %298 = vmatprep.subr.mxu0 0.0
    %299 = vmatpush1.msra.mxu0 0.0
    %300 = vmatprep.subr.mxu0 0.0
    %301 = vmatpush1.msra.mxu0 0.0
    %302 = vmatprep.subr.mxu0 0.0
    %303 = vmatpush1.msra.mxu0 0.0
    %304 = vmatprep.subr.mxu0 0.0
    %305 = vmatpush1.msra.mxu0 0.0
    %306 = vmatprep.subr.mxu0 0.0
    %307 = vmatpush1.msra.mxu0 0.0
    %308 = vmatprep.subr.mxu0 0.0
    %309 = vmatpush1.msra.mxu0 0.0
    %310 = vmatprep.subr.mxu0 0.0
    %311 = vmatpush1.msra.mxu0 0.0
    %312 = vmatprep.subr.mxu0 0.0
    %313 = vmatpush1.msra.mxu0 0.0
    %314 = vmatprep.subr.mxu0 0.0
    %315 = vmatpush1.msra.mxu0 0.0
    %316 = vmatprep.subr.mxu0 0.0
    %317 = vmatpush1.msra.mxu0 0.0
    %318 = vmatprep.subr.mxu0 0.0
    %319 = vmatpush1.msra.mxu0 0.0
    %320 = vmatprep.subr.mxu0 0.0
    %321 = vmatpush1.msra.mxu0 0.0
    %322 = vmatprep.subr.mxu0 0.0
    %323 = vmatpush1.msra.mxu0 0.0
    %324 = vmatprep.subr.mxu0 0.0
    %325 = vmatpush1.msra.mxu0 0.0
    %326 = vmatprep.subr.mxu0 0.0
    %327 = vmatpush1.msra.mxu0 0.0
    %328 = vmatprep.subr.mxu0 0.0
    %329 = vmatpush1.msra.mxu0 0.0
    %330 = vmatprep.subr.mxu0 0.0
    %331 = vmatpush1.msra.mxu0 0.0
    %332 = vmatprep.subr.mxu0 0.0
    %333 = vmatpush1.msra.mxu0 0.0
    %334 = vmatprep.subr.mxu0 0.0
    %335 = vmatpush1.msra.mxu0 0.0
    %336 = vmatprep.subr.mxu0 0.0
    %337 = vmatpush1.msra.mxu0 0.0
    %338 = vmatprep.subr.mxu0 0.0
    %339 = vmatpush1.msra.mxu0 0.0
    %340 = vmatprep.subr.mxu0 0.0
    %341 = vmatpush1.msra.mxu0 0.0
    %342 = vmatprep.subr.mxu0 0.0
    %343 = vmatpush1.msra.mxu0 0.0
    %344 = vmatprep.subr.mxu0 0.0
    %345 = vmatpush1.msra.mxu0 0.0
    %346 = vmatprep.subr.mxu0 0.0
    %347 = vmatpush1.msra.mxu0 0.0
    %348 = vmatprep.subr.mxu0 0.0
    %349 = vmatpush1.msra.mxu0 0.0
    %350 = vmatprep.subr.mxu0 0.0
    %351 = vmatpush1.msra.mxu0 0.0
    %352 = vmatprep.subr.mxu0 0.0
    %353 = vmatpush1.msra.mxu0 0.0
    %354 = vmatprep.subr.mxu0 0.0
    %355 = vmatpush1.msra.mxu0 0.0
    %356 = vmatprep.subr.mxu0 0.0
    %357 = vmatpush1.msra.mxu0 0.0
    %358 = vmatprep.mubr.f32.mxu0 0.0
    %v359 = vand.u32 %v56, 4294901760
    %v360 = vsub.f32 %v56, %v359
    %v361 = vand.u32 %v360, 4294901760
    %362 = vmatmul.mubr.f32.gmra.mrb[0].mxu0 %v361
    %v363 = vpop.f32.mrb[0].mxu0
    %v364 = vadd.f32 %v289, %v363
    %v365 = vpop.f32.mrb[0].mxu0
    %366 = vdwg.mxu0
    %367 = vmatprep.subr.mxu0 0.0
    %v368 = vand.u32 %v52, 4294901760
    %v369 = vsub.f32 %v52, %v368
    %v370 = vand.u32 %v369, 4294901760
    %371 = vmatpush1.msra.mxu0 %v370
    %372 = vmatprep.subr.mxu0 0.0
    %v373 = vand.u32 %v53, 4294901760
    %v374 = vsub.f32 %v53, %v373
    %v375 = vand.u32 %v374, 4294901760
    %376 = vmatpush1.msra.mxu0 %v375
    %377 = vmatprep.subr.mxu0 0.0
    %378 = vmatpush1.msra.mxu0 0.0
    %379 = vmatprep.subr.mxu0 0.0
    %380 = vmatpush1.msra.mxu0 0.0
    %381 = vmatprep.subr.mxu0 0.0
    %382 = vmatpush1.msra.mxu0 0.0
    %383 = vmatprep.subr.mxu0 0.0
    %384 = vmatpush1.msra.mxu0 0.0
    %385 = vmatprep.subr.mxu0 0.0
    %386 = vmatpush1.msra.mxu0 0.0
    %387 = vmatprep.subr.mxu0 0.0
    %388 = vmatpush1.msra.mxu0 0.0
    %389 = vmatprep.subr.mxu0 0.0
    %390 = vmatpush1.msra.mxu0 0.0
    %391 = vmatprep.subr.mxu0 0.0
    %392 = vmatpush1.msra.mxu0 0.0
    %393 = vmatprep.subr.mxu0 0.0
    %394 = vmatpush1.msra.mxu0 0.0
    %395 = vmatprep.subr.mxu0 0.0
    %396 = vmatpush1.msra.mxu0 0.0
    %397 = vmatprep.subr.mxu0 0.0
    %398 = vmatpush1.msra.mxu0 0.0
    %399 = vmatprep.subr.mxu0 0.0
    %400 = vmatpush1.msra.mxu0 0.0
    %401 = vmatprep.subr.mxu0 0.0
    %402 = vmatpush1.msra.mxu0 0.0
    %403 = vmatprep.subr.mxu0 0.0
    %404 = vmatpush1.msra.mxu0 0.0
    %405 = vmatprep.subr.mxu0 0.0
    %406 = vmatpush1.msra.mxu0 0.0
    %407 = vmatprep.subr.mxu0 0.0
    %408 = vmatpush1.msra.mxu0 0.0
    %409 = vmatprep.subr.mxu0 0.0
    %410 = vmatpush1.msra.mxu0 0.0
    %411 = vmatprep.subr.mxu0 0.0
    %412 = vmatpush1.msra.mxu0 0.0
    %413 = vmatprep.subr.mxu0 0.0
    %414 = vmatpush1.msra.mxu0 0.0
    %415 = vmatprep.subr.mxu0 0.0
    %416 = vmatpush1.msra.mxu0 0.0
    %417 = vmatprep.subr.mxu0 0.0
    %418 = vmatpush1.msra.mxu0 0.0
    %419 = vmatprep.subr.mxu0 0.0
    %420 = vmatpush1.msra.mxu0 0.0
    %421 = vmatprep.subr.mxu0 0.0
    %422 = vmatpush1.msra.mxu0 0.0
    %423 = vmatprep.subr.mxu0 0.0
    %424 = vmatpush1.msra.mxu0 0.0
    %425 = vmatprep.subr.mxu0 0.0
    %426 = vmatpush1.msra.mxu0 0.0
    %427 = vmatprep.subr.mxu0 0.0
    %428 = vmatpush1.msra.mxu0 0.0
    %429 = vmatprep.subr.mxu0 0.0
    %430 = vmatpush1.msra.mxu0 0.0
    %431 = vmatprep.subr.mxu0 0.0
    %432 = vmatpush1.msra.mxu0 0.0
    %433 = vmatprep.subr.mxu0 0.0
    %434 = vmatpush1.msra.mxu0 0.0
    %435 = vmatprep.subr.mxu0 0.0
    %436 = vmatpush1.msra.mxu0 0.0
    %437 = vmatprep.mubr.f32.mxu0 0.0
    %v438 = vand.u32 %v56, 4294901760
    %439 = vmatmul.mubr.f32.gmra.mrb[0].mxu0 %v438
    %v440 = vpop.f32.mrb[0].mxu0
    %v441 = vadd.f32 %v364, %v440
    %v442 = vpop.f32.mrb[0].mxu0
    %443 = vdwg.mxu0
    %444 = vmatprep.subr.mxu0 0.0
    %v445 = vand.u32 %v52, 4294901760
    %446 = vmatpush1.msra.mxu0 %v445
    %447 = vmatprep.subr.mxu0 0.0
    %v448 = vand.u32 %v53, 4294901760
    %449 = vmatpush1.msra.mxu0 %v448
    %450 = vmatprep.subr.mxu0 0.0
    %451 = vmatpush1.msra.mxu0 0.0
    %452 = vmatprep.subr.mxu0 0.0
    %453 = vmatpush1.msra.mxu0 0.0
    %454 = vmatprep.subr.mxu0 0.0
    %455 = vmatpush1.msra.mxu0 0.0
    %456 = vmatprep.subr.mxu0 0.0
    %457 = vmatpush1.msra.mxu0 0.0
    %458 = vmatprep.subr.mxu0 0.0
    %459 = vmatpush1.msra.mxu0 0.0
    %460 = vmatprep.subr.mxu0 0.0
    %461 = vmatpush1.msra.mxu0 0.0
    %462 = vmatprep.subr.mxu0 0.0
    %463 = vmatpush1.msra.mxu0 0.0
    %464 = vmatprep.subr.mxu0 0.0
    %465 = vmatpush1.msra.mxu0 0.0
    %466 = vmatprep.subr.mxu0 0.0
    %467 = vmatpush1.msra.mxu0 0.0
    %468 = vmatprep.subr.mxu0 0.0
    %469 = vmatpush1.msra.mxu0 0.0
    %470 = vmatprep.subr.mxu0 0.0
    %471 = vmatpush1.msra.mxu0 0.0
    %472 = vmatprep.subr.mxu0 0.0
    %473 = vmatpush1.msra.mxu0 0.0
    %474 = vmatprep.subr.mxu0 0.0
    %475 = vmatpush1.msra.mxu0 0.0
    %476 = vmatprep.subr.mxu0 0.0
    %477 = vmatpush1.msra.mxu0 0.0
    %478 = vmatprep.subr.mxu0 0.0
    %479 = vmatpush1.msra.mxu0 0.0
    %480 = vmatprep.subr.mxu0 0.0
    %481 = vmatpush1.msra.mxu0 0.0
    %482 = vmatprep.subr.mxu0 0.0
    %483 = vmatpush1.msra.mxu0 0.0
    %484 = vmatprep.subr.mxu0 0.0
    %485 = vmatpush1.msra.mxu0 0.0
    %486 = vmatprep.subr.mxu0 0.0
    %487 = vmatpush1.msra.mxu0 0.0
    %488 = vmatprep.subr.mxu0 0.0
    %489 = vmatpush1.msra.mxu0 0.0
    %490 = vmatprep.subr.mxu0 0.0
    %491 = vmatpush1.msra.mxu0 0.0
    %492 = vmatprep.subr.mxu0 0.0
    %493 = vmatpush1.msra.mxu0 0.0
    %494 = vmatprep.subr.mxu0 0.0
    %495 = vmatpush1.msra.mxu0 0.0
    %496 = vmatprep.subr.mxu0 0.0
    %497 = vmatpush1.msra.mxu0 0.0
    %498 = vmatprep.subr.mxu0 0.0
    %499 = vmatpush1.msra.mxu0 0.0
    %500 = vmatprep.subr.mxu0 0.0
    %501 = vmatpush1.msra.mxu0 0.0
    %502 = vmatprep.subr.mxu0 0.0
    %503 = vmatpush1.msra.mxu0 0.0
    %504 = vmatprep.subr.mxu0 0.0
    %505 = vmatpush1.msra.mxu0 0.0
    %506 = vmatprep.subr.mxu0 0.0
    %507 = vmatpush1.msra.mxu0 0.0
    %508 = vmatprep.subr.mxu0 0.0
    %509 = vmatpush1.msra.mxu0 0.0
    %510 = vmatprep.mubr.f32.mxu0 0.0
    %v511 = vand.u32 %v56, 4294901760
    %512 = vmatmul.mubr.f32.gmra.mrb[0].mxu0 %v511
    %v513 = vpop.f32.mrb[0].mxu0
    %v514 = vadd.f32 %v441, %v513
    %v515 = vpop.f32.mrb[0].mxu0
    %516 = vdwg.mxu0
    %518 = vrot.lane.b32.xlu0 %v514, 120
    %v519 = vpop.permute.xlu0 %518
    %v521 = vmax.f32 %v514, %v519
    %v522 = vld [vmem:[#allocation5] sm:$0xff]
    %v523 = vld [vmem:[#allocation5 + $0x30] sm:$0xff]
    %v525 = vsel %vm54, %v51, 0
    %527 = vmatprep.subr.mxu0 0.0
    %v528 = vand.u32 %v522, 4294901760
    %529 = vmatpush1.msra.mxu0 %v528
    %530 = vmatprep.subr.mxu0 0.0
    %v531 = vand.u32 %v523, 4294901760
    %532 = vmatpush1.msra.mxu0 %v531
    %533 = vmatprep.subr.mxu0 0.0
    %534 = vmatpush1.msra.mxu0 0.0
    %535 = vmatprep.subr.mxu0 0.0
    %536 = vmatpush1.msra.mxu0 0.0
    %537 = vmatprep.subr.mxu0 0.0
    %538 = vmatpush1.msra.mxu0 0.0
    %539 = vmatprep.subr.mxu0 0.0
    %540 = vmatpush1.msra.mxu0 0.0
    %541 = vmatprep.subr.mxu0 0.0
    %542 = vmatpush1.msra.mxu0 0.0
    %543 = vmatprep.subr.mxu0 0.0
    %544 = vmatpush1.msra.mxu0 0.0
    %545 = vmatprep.subr.mxu0 0.0
    %546 = vmatpush1.msra.mxu0 0.0
    %547 = vmatprep.subr.mxu0 0.0
    %548 = vmatpush1.msra.mxu0 0.0
    %549 = vmatprep.subr.mxu0 0.0
    %550 = vmatpush1.msra.mxu0 0.0
    %551 = vmatprep.subr.mxu0 0.0
    %552 = vmatpush1.msra.mxu0 0.0
    %553 = vmatprep.subr.mxu0 0.0
    %554 = vmatpush1.msra.mxu0 0.0
    %555 = vmatprep.subr.mxu0 0.0
    %556 = vmatpush1.msra.mxu0 0.0
    %557 = vmatprep.subr.mxu0 0.0
    %558 = vmatpush1.msra.mxu0 0.0
    %559 = vmatprep.subr.mxu0 0.0
    %560 = vmatpush1.msra.mxu0 0.0
    %561 = vmatprep.subr.mxu0 0.0
    %562 = vmatpush1.msra.mxu0 0.0
    %563 = vmatprep.subr.mxu0 0.0
    %564 = vmatpush1.msra.mxu0 0.0
    %565 = vmatprep.subr.mxu0 0.0
    %566 = vmatpush1.msra.mxu0 0.0
    %567 = vmatprep.subr.mxu0 0.0
    %568 = vmatpush1.msra.mxu0 0.0
    %569 = vmatprep.subr.mxu0 0.0
    %570 = vmatpush1.msra.mxu0 0.0
    %571 = vmatprep.subr.mxu0 0.0
    %572 = vmatpush1.msra.mxu0 0.0
    %573 = vmatprep.subr.mxu0 0.0
    %574 = vmatpush1.msra.mxu0 0.0
    %575 = vmatprep.subr.mxu0 0.0
    %576 = vmatpush1.msra.mxu0 0.0
    %577 = vmatprep.subr.mxu0 0.0
    %578 = vmatpush1.msra.mxu0 0.0
    %579 = vmatprep.subr.mxu0 0.0
    %580 = vmatpush1.msra.mxu0 0.0
    %581 = vmatprep.subr.mxu0 0.0
    %582 = vmatpush1.msra.mxu0 0.0
    %583 = vmatprep.subr.mxu0 0.0
    %584 = vmatpush1.msra.mxu0 0.0
    %585 = vmatprep.subr.mxu0 0.0
    %586 = vmatpush1.msra.mxu0 0.0
    %587 = vmatprep.subr.mxu0 0.0
    %588 = vmatpush1.msra.mxu0 0.0
    %589 = vmatprep.subr.mxu0 0.0
    %590 = vmatpush1.msra.mxu0 0.0
    %591 = vmatprep.subr.mxu0 0.0
    %592 = vmatpush1.msra.mxu0 0.0
    %593 = vmatprep.mubr.f32.mxu0 0.0
    %v594 = vand.u32 %v525, 4294901760
    %v595 = vsub.f32 %v525, %v594
    %v596 = vand.u32 %v595, 4294901760
    %v597 = vsub.f32 %v595, %v596
    %v598 = vand.u32 %v597, 4294901760
    %599 = vmatmul.mubr.f32.gmra.mrb[0].mxu0 %v598
    %v600 = vpop.f32.mrb[0].mxu0
    %v601 = vadd.f32 0.0, %v600
    %v602 = vpop.f32.mrb[0].mxu0
    %603 = vdwg.mxu0
    %604 = vmatprep.subr.mxu0 0.0
    %v605 = vand.u32 %v522, 4294901760
    %v606 = vsub.f32 %v522, %v605
    %v607 = vand.u32 %v606, 4294901760
    %v608 = vsub.f32 %v606, %v607
    %v609 = vand.u32 %v608, 4294901760
    %610 = vmatpush1.msra.mxu0 %v609
    %611 = vmatprep.subr.mxu0 0.0
    %v612 = vand.u32 %v523, 4294901760
    %v613 = vsub.f32 %v523, %v612
    %v614 = vand.u32 %v613, 4294901760
    %v615 = vsub.f32 %v613, %v614
    %v616 = vand.u32 %v615, 4294901760
    %617 = vmatpush1.msra.mxu0 %v616
    %618 = vmatprep.subr.mxu0 0.0
    %619 = vmatpush1.msra.mxu0 0.0
    %620 = vmatprep.subr.mxu0 0.0
    %621 = vmatpush1.msra.mxu0 0.0
    %622 = vmatprep.subr.mxu0 0.0
    %623 = vmatpush1.msra.mxu0 0.0
    %624 = vmatprep.subr.mxu0 0.0
    %625 = vmatpush1.msra.mxu0 0.0
    %626 = vmatprep.subr.mxu0 0.0
    %627 = vmatpush1.msra.mxu0 0.0
    %628 = vmatprep.subr.mxu0 0.0
    %629 = vmatpush1.msra.mxu0 0.0
    %630 = vmatprep.subr.mxu0 0.0
    %631 = vmatpush1.msra.mxu0 0.0
    %632 = vmatprep.subr.mxu0 0.0
    %633 = vmatpush1.msra.mxu0 0.0
    %634 = vmatprep.subr.mxu0 0.0
    %635 = vmatpush1.msra.mxu0 0.0
    %636 = vmatprep.subr.mxu0 0.0
    %637 = vmatpush1.msra.mxu0 0.0
    %638 = vmatprep.subr.mxu0 0.0
    %639 = vmatpush1.msra.mxu0 0.0
    %640 = vmatprep.subr.mxu0 0.0
    %641 = vmatpush1.msra.mxu0 0.0
    %642 = vmatprep.subr.mxu0 0.0
    %643 = vmatpush1.msra.mxu0 0.0
    %644 = vmatprep.subr.mxu0 0.0
    %645 = vmatpush1.msra.mxu0 0.0
    %646 = vmatprep.subr.mxu0 0.0
    %647 = vmatpush1.msra.mxu0 0.0
    %648 = vmatprep.subr.mxu0 0.0
    %649 = vmatpush1.msra.mxu0 0.0
    %650 = vmatprep.subr.mxu0 0.0
    %651 = vmatpush1.msra.mxu0 0.0
    %652 = vmatprep.subr.mxu0 0.0
    %653 = vmatpush1.msra.mxu0 0.0
    %654 = vmatprep.subr.mxu0 0.0
    %655 = vmatpush1.msra.mxu0 0.0
    %656 = vmatprep.subr.mxu0 0.0
    %657 = vmatpush1.msra.mxu0 0.0
    %658 = vmatprep.subr.mxu0 0.0
    %659 = vmatpush1.msra.mxu0 0.0
    %660 = vmatprep.subr.mxu0 0.0
    %661 = vmatpush1.msra.mxu0 0.0
    %662 = vmatprep.subr.mxu0 0.0
    %663 = vmatpush1.msra.mxu0 0.0
    %664 = vmatprep.subr.mxu0 0.0
    %665 = vmatpush1.msra.mxu0 0.0
    %666 = vmatprep.subr.mxu0 0.0
    %667 = vmatpush1.msra.mxu0 0.0
    %668 = vmatprep.subr.mxu0 0.0
    %669 = vmatpush1.msra.mxu0 0.0
    %670 = vmatprep.subr.mxu0 0.0
    %671 = vmatpush1.msra.mxu0 0.0
    %672 = vmatprep.subr.mxu0 0.0
    %673 = vmatpush1.msra.mxu0 0.0
    %674 = vmatprep.subr.mxu0 0.0
    %675 = vmatpush1.msra.mxu0 0.0
    %676 = vmatprep.subr.mxu0 0.0
    %677 = vmatpush1.msra.mxu0 0.0
    %678 = vmatprep.mubr.f32.mxu0 0.0
    %v679 = vand.u32 %v525, 4294901760
    %680 = vmatmul.mubr.f32.gmra.mrb[0].mxu0 %v679
    %v681 = vpop.f32.mrb[0].mxu0
    %v682 = vadd.f32 %v601, %v681
    %v683 = vpop.f32.mrb[0].mxu0
    %684 = vdwg.mxu0
    %685 = vmatprep.subr.mxu0 0.0
    %v686 = vand.u32 %v522, 4294901760
    %v687 = vsub.f32 %v522, %v686
    %688 = vmatpush1.msra.mxu0 %v687
    %689 = vmatprep.subr.mxu0 0.0
    %v690 = vand.u32 %v523, 4294901760
    %v691 = vsub.f32 %v523, %v690
    %692 = vmatpush1.msra.mxu0 %v691
    %693 = vmatprep.subr.mxu0 0.0
    %694 = vmatpush1.msra.mxu0 0.0
    %695 = vmatprep.subr.mxu0 0.0
    %696 = vmatpush1.msra.mxu0 0.0
    %697 = vmatprep.subr.mxu0 0.0
    %698 = vmatpush1.msra.mxu0 0.0
    %699 = vmatprep.subr.mxu0 0.0
    %700 = vmatpush1.msra.mxu0 0.0
    %701 = vmatprep.subr.mxu0 0.0
    %702 = vmatpush1.msra.mxu0 0.0
    %703 = vmatprep.subr.mxu0 0.0
    %704 = vmatpush1.msra.mxu0 0.0
    %705 = vmatprep.subr.mxu0 0.0
    %706 = vmatpush1.msra.mxu0 0.0
    %707 = vmatprep.subr.mxu0 0.0
    %708 = vmatpush1.msra.mxu0 0.0
    %709 = vmatprep.subr.mxu0 0.0
    %710 = vmatpush1.msra.mxu0 0.0
    %711 = vmatprep.subr.mxu0 0.0
    %712 = vmatpush1.msra.mxu0 0.0
    %713 = vmatprep.subr.mxu0 0.0
    %714 = vmatpush1.msra.mxu0 0.0
    %715 = vmatprep.subr.mxu0 0.0
    %716 = vmatpush1.msra.mxu0 0.0
    %717 = vmatprep.subr.mxu0 0.0
    %718 = vmatpush1.msra.mxu0 0.0
    %719 = vmatprep.subr.mxu0 0.0
    %720 = vmatpush1.msra.mxu0 0.0
    %721 = vmatprep.subr.mxu0 0.0
    %722 = vmatpush1.msra.mxu0 0.0
    %723 = vmatprep.subr.mxu0 0.0
    %724 = vmatpush1.msra.mxu0 0.0
    %725 = vmatprep.subr.mxu0 0.0
    %726 = vmatpush1.msra.mxu0 0.0
    %727 = vmatprep.subr.mxu0 0.0
    %728 = vmatpush1.msra.mxu0 0.0
    %729 = vmatprep.subr.mxu0 0.0
    %730 = vmatpush1.msra.mxu0 0.0
    %731 = vmatprep.subr.mxu0 0.0
    %732 = vmatpush1.msra.mxu0 0.0
    %733 = vmatprep.subr.mxu0 0.0
    %734 = vmatpush1.msra.mxu0 0.0
    %735 = vmatprep.subr.mxu0 0.0
    %736 = vmatpush1.msra.mxu0 0.0
    %737 = vmatprep.subr.mxu0 0.0
    %738 = vmatpush1.msra.mxu0 0.0
    %739 = vmatprep.subr.mxu0 0.0
    %740 = vmatpush1.msra.mxu0 0.0
    %741 = vmatprep.subr.mxu0 0.0
    %742 = vmatpush1.msra.mxu0 0.0
    %743 = vmatprep.subr.mxu0 0.0
    %744 = vmatpush1.msra.mxu0 0.0
    %745 = vmatprep.subr.mxu0 0.0
    %746 = vmatpush1.msra.mxu0 0.0
    %747 = vmatprep.subr.mxu0 0.0
    %748 = vmatpush1.msra.mxu0 0.0
    %749 = vmatprep.subr.mxu0 0.0
    %750 = vmatpush1.msra.mxu0 0.0
    %751 = vmatprep.subr.mxu0 0.0
    %752 = vmatpush1.msra.mxu0 0.0
    %753 = vmatprep.mubr.f32.mxu0 0.0
    %v754 = vand.u32 %v525, 4294901760
    %v755 = vsub.f32 %v525, %v754
    %756 = vmatmul.mubr.f32.gmra.mrb[0].mxu0 %v755
    %v757 = vpop.f32.mrb[0].mxu0
    %v758 = vadd.f32 %v682, %v757
    %v759 = vpop.f32.mrb[0].mxu0
    %760 = vdwg.mxu0
    %761 = vmatprep.subr.mxu0 0.0
    %v762 = vand.u32 %v522, 4294901760
    %763 = vmatpush1.msra.mxu0 %v762
    %764 = vmatprep.subr.mxu0 0.0
    %v765 = vand.u32 %v523, 4294901760
    %766 = vmatpush1.msra.mxu0 %v765
    %767 = vmatprep.subr.mxu0 0.0
    %768 = vmatpush1.msra.mxu0 0.0
    %769 = vmatprep.subr.mxu0 0.0
    %770 = vmatpush1.msra.mxu0 0.0
    %771 = vmatprep.subr.mxu0 0.0
    %772 = vmatpush1.msra.mxu0 0.0
    %773 = vmatprep.subr.mxu0 0.0
    %774 = vmatpush1.msra.mxu0 0.0
    %775 = vmatprep.subr.mxu0 0.0
    %776 = vmatpush1.msra.mxu0 0.0
    %777 = vmatprep.subr.mxu0 0.0
    %778 = vmatpush1.msra.mxu0 0.0
    %779 = vmatprep.subr.mxu0 0.0
    %780 = vmatpush1.msra.mxu0 0.0
    %781 = vmatprep.subr.mxu0 0.0
    %782 = vmatpush1.msra.mxu0 0.0
    %783 = vmatprep.subr.mxu0 0.0
    %784 = vmatpush1.msra.mxu0 0.0
    %785 = vmatprep.subr.mxu0 0.0
    %786 = vmatpush1.msra.mxu0 0.0
    %787 = vmatprep.subr.mxu0 0.0
    %788 = vmatpush1.msra.mxu0 0.0
    %789 = vmatprep.subr.mxu0 0.0
    %790 = vmatpush1.msra.mxu0 0.0
    %791 = vmatprep.subr.mxu0 0.0
    %792 = vmatpush1.msra.mxu0 0.0
    %793 = vmatprep.subr.mxu0 0.0
    %794 = vmatpush1.msra.mxu0 0.0
    %795 = vmatprep.subr.mxu0 0.0
    %796 = vmatpush1.msra.mxu0 0.0
    %797 = vmatprep.subr.mxu0 0.0
    %798 = vmatpush1.msra.mxu0 0.0
    %799 = vmatprep.subr.mxu0 0.0
    %800 = vmatpush1.msra.mxu0 0.0
    %801 = vmatprep.subr.mxu0 0.0
    %802 = vmatpush1.msra.mxu0 0.0
    %803 = vmatprep.subr.mxu0 0.0
    %804 = vmatpush1.msra.mxu0 0.0
    %805 = vmatprep.subr.mxu0 0.0
    %806 = vmatpush1.msra.mxu0 0.0
    %807 = vmatprep.subr.mxu0 0.0
    %808 = vmatpush1.msra.mxu0 0.0
    %809 = vmatprep.subr.mxu0 0.0
    %810 = vmatpush1.msra.mxu0 0.0
    %811 = vmatprep.subr.mxu0 0.0
    %812 = vmatpush1.msra.mxu0 0.0
    %813 = vmatprep.subr.mxu0 0.0
    %814 = vmatpush1.msra.mxu0 0.0
    %815 = vmatprep.subr.mxu0 0.0
    %816 = vmatpush1.msra.mxu0 0.0
    %817 = vmatprep.subr.mxu0 0.0
    %818 = vmatpush1.msra.mxu0 0.0
    %819 = vmatprep.subr.mxu0 0.0
    %820 = vmatpush1.msra.mxu0 0.0
    %821 = vmatprep.subr.mxu0 0.0
    %822 = vmatpush1.msra.mxu0 0.0
    %823 = vmatprep.subr.mxu0 0.0
    %824 = vmatpush1.msra.mxu0 0.0
    %825 = vmatprep.subr.mxu0 0.0
    %826 = vmatpush1.msra.mxu0 0.0
    %827 = vmatprep.mubr.f32.mxu0 0.0
    %v828 = vand.u32 %v525, 4294901760
    %v829 = vsub.f32 %v525, %v828
    %v830 = vand.u32 %v829, 4294901760
    %831 = vmatmul.mubr.f32.gmra.mrb[0].mxu0 %v830
    %v832 = vpop.f32.mrb[0].mxu0
    %v833 = vadd.f32 %v758, %v832
    %v834 = vpop.f32.mrb[0].mxu0
    %835 = vdwg.mxu0
    %836 = vmatprep.subr.mxu0 0.0
    %v837 = vand.u32 %v522, 4294901760
    %v838 = vsub.f32 %v522, %v837
    %v839 = vand.u32 %v838, 4294901760
    %840 = vmatpush1.msra.mxu0 %v839
    %841 = vmatprep.subr.mxu0 0.0
    %v842 = vand.u32 %v523, 4294901760
    %v843 = vsub.f32 %v523, %v842
    %v844 = vand.u32 %v843, 4294901760
    %845 = vmatpush1.msra.mxu0 %v844
    %846 = vmatprep.subr.mxu0 0.0
    %847 = vmatpush1.msra.mxu0 0.0
    %848 = vmatprep.subr.mxu0 0.0
    %849 = vmatpush1.msra.mxu0 0.0
    %850 = vmatprep.subr.mxu0 0.0
    %851 = vmatpush1.msra.mxu0 0.0
    %852 = vmatprep.subr.mxu0 0.0
    %853 = vmatpush1.msra.mxu0 0.0
    %854 = vmatprep.subr.mxu0 0.0
    %855 = vmatpush1.msra.mxu0 0.0
    %856 = vmatprep.subr.mxu0 0.0
    %857 = vmatpush1.msra.mxu0 0.0
    %858 = vmatprep.subr.mxu0 0.0
    %859 = vmatpush1.msra.mxu0 0.0
    %860 = vmatprep.subr.mxu0 0.0
    %861 = vmatpush1.msra.mxu0 0.0
    %862 = vmatprep.subr.mxu0 0.0
    %863 = vmatpush1.msra.mxu0 0.0
    %864 = vmatprep.subr.mxu0 0.0
    %865 = vmatpush1.msra.mxu0 0.0
    %866 = vmatprep.subr.mxu0 0.0
    %867 = vmatpush1.msra.mxu0 0.0
    %868 = vmatprep.subr.mxu0 0.0
    %869 = vmatpush1.msra.mxu0 0.0
    %870 = vmatprep.subr.mxu0 0.0
    %871 = vmatpush1.msra.mxu0 0.0
    %872 = vmatprep.subr.mxu0 0.0
    %873 = vmatpush1.msra.mxu0 0.0
    %874 = vmatprep.subr.mxu0 0.0
    %875 = vmatpush1.msra.mxu0 0.0
    %876 = vmatprep.subr.mxu0 0.0
    %877 = vmatpush1.msra.mxu0 0.0
    %878 = vmatprep.subr.mxu0 0.0
    %879 = vmatpush1.msra.mxu0 0.0
    %880 = vmatprep.subr.mxu0 0.0
    %881 = vmatpush1.msra.mxu0 0.0
    %882 = vmatprep.subr.mxu0 0.0
    %883 = vmatpush1.msra.mxu0 0.0
    %884 = vmatprep.subr.mxu0 0.0
    %885 = vmatpush1.msra.mxu0 0.0
    %886 = vmatprep.subr.mxu0 0.0
    %887 = vmatpush1.msra.mxu0 0.0
    %888 = vmatprep.subr.mxu0 0.0
    %889 = vmatpush1.msra.mxu0 0.0
    %890 = vmatprep.subr.mxu0 0.0
    %891 = vmatpush1.msra.mxu0 0.0
    %892 = vmatprep.subr.mxu0 0.0
    %893 = vmatpush1.msra.mxu0 0.0
    %894 = vmatprep.subr.mxu0 0.0
    %895 = vmatpush1.msra.mxu0 0.0
    %896 = vmatprep.subr.mxu0 0.0
    %897 = vmatpush1.msra.mxu0 0.0
    %898 = vmatprep.subr.mxu0 0.0
    %899 = vmatpush1.msra.mxu0 0.0
    %900 = vmatprep.subr.mxu0 0.0
    %901 = vmatpush1.msra.mxu0 0.0
    %902 = vmatprep.subr.mxu0 0.0
    %903 = vmatpush1.msra.mxu0 0.0
    %904 = vmatprep.subr.mxu0 0.0
    %905 = vmatpush1.msra.mxu0 0.0
    %906 = vmatprep.mubr.f32.mxu0 0.0
    %v907 = vand.u32 %v525, 4294901760
    %908 = vmatmul.mubr.f32.gmra.mrb[0].mxu0 %v907
    %v909 = vpop.f32.mrb[0].mxu0
    %v910 = vadd.f32 %v833, %v909
    %v911 = vpop.f32.mrb[0].mxu0
    %912 = vdwg.mxu0
    %913 = vmatprep.subr.mxu0 0.0
    %v914 = vand.u32 %v522, 4294901760
    %915 = vmatpush1.msra.mxu0 %v914
    %916 = vmatprep.subr.mxu0 0.0
    %v917 = vand.u32 %v523, 4294901760
    %918 = vmatpush1.msra.mxu0 %v917
    %919 = vmatprep.subr.mxu0 0.0
    %920 = vmatpush1.msra.mxu0 0.0
    %921 = vmatprep.subr.mxu0 0.0
    %922 = vmatpush1.msra.mxu0 0.0
    %923 = vmatprep.subr.mxu0 0.0
    %924 = vmatpush1.msra.mxu0 0.0
    %925 = vmatprep.subr.mxu0 0.0
    %926 = vmatpush1.msra.mxu0 0.0
    %927 = vmatprep.subr.mxu0 0.0
    %928 = vmatpush1.msra.mxu0 0.0
    %929 = vmatprep.subr.mxu0 0.0
    %930 = vmatpush1.msra.mxu0 0.0
    %931 = vmatprep.subr.mxu0 0.0
    %932 = vmatpush1.msra.mxu0 0.0
    %933 = vmatprep.subr.mxu0 0.0
    %934 = vmatpush1.msra.mxu0 0.0
    %935 = vmatprep.subr.mxu0 0.0
    %936 = vmatpush1.msra.mxu0 0.0
    %937 = vmatprep.subr.mxu0 0.0
    %938 = vmatpush1.msra.mxu0 0.0
    %939 = vmatprep.subr.mxu0 0.0
    %940 = vmatpush1.msra.mxu0 0.0
    %941 = vmatprep.subr.mxu0 0.0
    %942 = vmatpush1.msra.mxu0 0.0
    %943 = vmatprep.subr.mxu0 0.0
    %944 = vmatpush1.msra.mxu0 0.0
    %945 = vmatprep.subr.mxu0 0.0
    %946 = vmatpush1.msra.mxu0 0.0
    %947 = vmatprep.subr.mxu0 0.0
    %948 = vmatpush1.msra.mxu0 0.0
    %949 = vmatprep.subr.mxu0 0.0
    %950 = vmatpush1.msra.mxu0 0.0
    %951 = vmatprep.subr.mxu0 0.0
    %952 = vmatpush1.msra.mxu0 0.0
    %953 = vmatprep.subr.mxu0 0.0
    %954 = vmatpush1.msra.mxu0 0.0
    %955 = vmatprep.subr.mxu0 0.0
    %956 = vmatpush1.msra.mxu0 0.0
    %957 = vmatprep.subr.mxu0 0.0
    %958 = vmatpush1.msra.mxu0 0.0
    %959 = vmatprep.subr.mxu0 0.0
    %960 = vmatpush1.msra.mxu0 0.0
    %961 = vmatprep.subr.mxu0 0.0
    %962 = vmatpush1.msra.mxu0 0.0
    %963 = vmatprep.subr.mxu0 0.0
    %964 = vmatpush1.msra.mxu0 0.0
    %965 = vmatprep.subr.mxu0 0.0
    %966 = vmatpush1.msra.mxu0 0.0
    %967 = vmatprep.subr.mxu0 0.0
    %968 = vmatpush1.msra.mxu0 0.0
    %969 = vmatprep.subr.mxu0 0.0
    %970 = vmatpush1.msra.mxu0 0.0
    %971 = vmatprep.subr.mxu0 0.0
    %972 = vmatpush1.msra.mxu0 0.0
    %973 = vmatprep.subr.mxu0 0.0
    %974 = vmatpush1.msra.mxu0 0.0
    %975 = vmatprep.subr.mxu0 0.0
    %976 = vmatpush1.msra.mxu0 0.0
    %977 = vmatprep.subr.mxu0 0.0
    %978 = vmatpush1.msra.mxu0 0.0
    %979 = vmatprep.mubr.f32.mxu0 0.0
    %v980 = vand.u32 %v525, 4294901760
    %981 = vmatmul.mubr.f32.gmra.mrb[0].mxu0 %v980
    %v982 = vpop.f32.mrb[0].mxu0
    %v983 = vadd.f32 %v910, %v982
    %v984 = vpop.f32.mrb[0].mxu0
    %985 = vdwg.mxu0
    %987 = vrot.lane.b32.xlu0 %v983, 120
    %v988 = vpop.permute.xlu0 %987
    %990 = vrot.lane.b32.xlu0 %v983, 112
    %v991 = vpop.permute.xlu0 %990
    %v993 = vld [vmem:[#allocation5 + $0x10] sm:$0xff]
    %v994 = vld [vmem:[#allocation5 + $0x40] sm:$0xff]
    %v995 = vld [vmem:[#allocation5 + $0x28] sm:$0xff]
    %v996 = vld [vmem:[#allocation5 + $0x58] sm:$0xff]
    %998 = vset.pattern.permute.xlu0 2
    %999 = vperm.xlu0 %998, %v995
    %v1000 = vpop.permute.xlu0 %999
    %1003 = vset.pattern.permute.xlu0 2
    %1004 = vperm.xlu0 %1003, %v996
    %v1005 = vpop.permute.xlu0 %1004
    %vm1007 = vcmask 195584
    %v1009 = vsel %vm1007, %v993, 0
    %v1012 = vsel %vm1007, %v994, 0
    %1014 = vmatprep.subr.mxu0 0.0
    %v1015 = vand.u32 %v983, 4294901760
    %1016 = vmatpush1.msra.mxu0 %v1015
    %1017 = vmatprep.subr.mxu0 0.0
    %v1018 = vand.u32 %v988, 4294901760
    %1019 = vmatpush1.msra.mxu0 %v1018
    %1020 = vmatprep.subr.mxu0 0.0
    %v1021 = vand.u32 %v991, 4294901760
    %1022 = vmatpush1.msra.mxu0 %v1021
    %1023 = vmatprep.subr.mxu0 0.0
    %1024 = vmatpush1.msra.mxu0 0.0
    %1025 = vmatprep.subr.mxu0 0.0
    %1026 = vmatpush1.msra.mxu0 0.0
    %1027 = vmatprep.subr.mxu0 0.0
    %1028 = vmatpush1.msra.mxu0 0.0
    %1029 = vmatprep.subr.mxu0 0.0
    %1030 = vmatpush1.msra.mxu0 0.0
    %1031 = vmatprep.subr.mxu0 0.0
    %1032 = vmatpush1.msra.mxu0 0.0
    %1033 = vmatprep.subr.mxu0 0.0
    %1034 = vmatpush1.msra.mxu0 0.0
    %1035 = vmatprep.subr.mxu0 0.0
    %1036 = vmatpush1.msra.mxu0 0.0
    %1037 = vmatprep.subr.mxu0 0.0
    %1038 = vmatpush1.msra.mxu0 0.0
    %1039 = vmatprep.subr.mxu0 0.0
    %1040 = vmatpush1.msra.mxu0 0.0
    %1041 = vmatprep.subr.mxu0 0.0
    %1042 = vmatpush1.msra.mxu0 0.0
    %1043 = vmatprep.subr.mxu0 0.0
    %1044 = vmatpush1.msra.mxu0 0.0
    %1045 = vmatprep.subr.mxu0 0.0
    %1046 = vmatpush1.msra.mxu0 0.0
    %1047 = vmatprep.subr.mxu0 0.0
    %1048 = vmatpush1.msra.mxu0 0.0
    %1049 = vmatprep.subr.mxu0 0.0
    %1050 = vmatpush1.msra.mxu0 0.0
    %1051 = vmatprep.subr.mxu0 0.0
    %1052 = vmatpush1.msra.mxu0 0.0
    %1053 = vmatprep.subr.mxu0 0.0
    %1054 = vmatpush1.msra.mxu0 0.0
    %1055 = vmatprep.subr.mxu0 0.0
    %1056 = vmatpush1.msra.mxu0 0.0
    %1057 = vmatprep.subr.mxu0 0.0
    %1058 = vmatpush1.msra.mxu0 0.0
    %1059 = vmatprep.subr.mxu0 0.0
    %1060 = vmatpush1.msra.mxu0 0.0
    %1061 = vmatprep.subr.mxu0 0.0
    %1062 = vmatpush1.msra.mxu0 0.0
    %1063 = vmatprep.subr.mxu0 0.0
    %1064 = vmatpush1.msra.mxu0 0.0
    %1065 = vmatprep.subr.mxu0 0.0
    %1066 = vmatpush1.msra.mxu0 0.0
    %1067 = vmatprep.subr.mxu0 0.0
    %1068 = vmatpush1.msra.mxu0 0.0
    %1069 = vmatprep.subr.mxu0 0.0
    %1070 = vmatpush1.msra.mxu0 0.0
    %1071 = vmatprep.subr.mxu0 0.0
    %1072 = vmatpush1.msra.mxu0 0.0
    %1073 = vmatprep.subr.mxu0 0.0
    %1074 = vmatpush1.msra.mxu0 0.0
    %1075 = vmatprep.subr.mxu0 0.0
    %1076 = vmatpush1.msra.mxu0 0.0
    %1077 = vmatprep.subr.mxu0 0.0
    %1078 = vmatpush1.msra.mxu0 0.0
    %1079 = vmatprep.subr.mxu0 0.0
    %1080 = vmatpush1.msra.mxu0 0.0
    %1081 = vmatprep.mubr.f32.mxu0 0.0
    %v1082 = vand.u32 %v1009, 4294901760
    %v1083 = vsub.f32 %v1009, %v1082
    %v1084 = vand.u32 %v1083, 4294901760
    %v1085 = vsub.f32 %v1083, %v1084
    %v1086 = vand.u32 %v1085, 4294901760
    %1087 = vmatmul.mubr.f32.gmra.mrb[0].mxu0 %v1086
    %v1088 = vpop.f32.mrb[0].mxu0
    %v1089 = vadd.f32 %v1000, %v1088
    %v1090 = vpop.f32.mrb[0].mxu0
    %1091 = vmatprep.mubr.f32.mxu0 0.0
    %v1092 = vand.u32 %v1012, 4294901760
    %v1093 = vsub.f32 %v1012, %v1092
    %v1094 = vand.u32 %v1093, 4294901760
    %v1095 = vsub.f32 %v1093, %v1094
    %v1096 = vand.u32 %v1095, 4294901760
    %1097 = vmatmul.mubr.f32.gmra.mrb[0].mxu0 %v1096
    %v1098 = vpop.f32.mrb[0].mxu0
    %v1099 = vadd.f32 %v1005, %v1098
    %v1100 = vpop.f32.mrb[0].mxu0
    %1101 = vdwg.mxu0
    %1102 = vmatprep.subr.mxu0 0.0
    %v1103 = vand.u32 %v983, 4294901760
    %v1104 = vsub.f32 %v983, %v1103
    %v1105 = vand.u32 %v1104, 4294901760
    %v1106 = vsub.f32 %v1104, %v1105
    %v1107 = vand.u32 %v1106, 4294901760
    %1108 = vmatpush1.msra.mxu0 %v1107
    %1109 = vmatprep.subr.mxu0 0.0
    %v1110 = vand.u32 %v988, 4294901760
    %v1111 = vsub.f32 %v988, %v1110
    %v1112 = vand.u32 %v1111, 4294901760
    %v1113 = vsub.f32 %v1111, %v1112
    %v1114 = vand.u32 %v1113, 4294901760
    %1115 = vmatpush1.msra.mxu0 %v1114
    %1116 = vmatprep.subr.mxu0 0.0
    %v1117 = vand.u32 %v991, 4294901760
    %v1118 = vsub.f32 %v991, %v1117
    %v1119 = vand.u32 %v1118, 4294901760
    %v1120 = vsub.f32 %v1118, %v1119
    %v1121 = vand.u32 %v1120, 4294901760
    %1122 = vmatpush1.msra.mxu0 %v1121
    %1123 = vmatprep.subr.mxu0 0.0
    %1124 = vmatpush1.msra.mxu0 0.0
    %1125 = vmatprep.subr.mxu0 0.0
    %1126 = vmatpush1.msra.mxu0 0.0
    %1127 = vmatprep.subr.mxu0 0.0
    %1128 = vmatpush1.msra.mxu0 0.0
    %1129 = vmatprep.subr.mxu0 0.0
    %1130 = vmatpush1.msra.mxu0 0.0
    %1131 = vmatprep.subr.mxu0 0.0
    %1132 = vmatpush1.msra.mxu0 0.0
    %1133 = vmatprep.subr.mxu0 0.0
    %1134 = vmatpush1.msra.mxu0 0.0
    %1135 = vmatprep.subr.mxu0 0.0
    %1136 = vmatpush1.msra.mxu0 0.0
    %1137 = vmatprep.subr.mxu0 0.0
    %1138 = vmatpush1.msra.mxu0 0.0
    %1139 = vmatprep.subr.mxu0 0.0
    %1140 = vmatpush1.msra.mxu0 0.0
    %1141 = vmatprep.subr.mxu0 0.0
    %1142 = vmatpush1.msra.mxu0 0.0
    %1143 = vmatprep.subr.mxu0 0.0
    %1144 = vmatpush1.msra.mxu0 0.0
    %1145 = vmatprep.subr.mxu0 0.0
    %1146 = vmatpush1.msra.mxu0 0.0
    %1147 = vmatprep.subr.mxu0 0.0
    %1148 = vmatpush1.msra.mxu0 0.0
    %1149 = vmatprep.subr.mxu0 0.0
    %1150 = vmatpush1.msra.mxu0 0.0
    %1151 = vmatprep.subr.mxu0 0.0
    %1152 = vmatpush1.msra.mxu0 0.0
    %1153 = vmatprep.subr.mxu0 0.0
    %1154 = vmatpush1.msra.mxu0 0.0
    %1155 = vmatprep.subr.mxu0 0.0
    %1156 = vmatpush1.msra.mxu0 0.0
    %1157 = vmatprep.subr.mxu0 0.0
    %1158 = vmatpush1.msra.mxu0 0.0
    %1159 = vmatprep.subr.mxu0 0.0
    %1160 = vmatpush1.msra.mxu0 0.0
    %1161 = vmatprep.subr.mxu0 0.0
    %1162 = vmatpush1.msra.mxu0 0.0
    %1163 = vmatprep.subr.mxu0 0.0
    %1164 = vmatpush1.msra.mxu0 0.0
    %1165 = vmatprep.subr.mxu0 0.0
    %1166 = vmatpush1.msra.mxu0 0.0
    %1167 = vmatprep.subr.mxu0 0.0
    %1168 = vmatpush1.msra.mxu0 0.0
    %1169 = vmatprep.subr.mxu0 0.0
    %1170 = vmatpush1.msra.mxu0 0.0
    %1171 = vmatprep.subr.mxu0 0.0
    %1172 = vmatpush1.msra.mxu0 0.0
    %1173 = vmatprep.subr.mxu0 0.0
    %1174 = vmatpush1.msra.mxu0 0.0
    %1175 = vmatprep.subr.mxu0 0.0
    %1176 = vmatpush1.msra.mxu0 0.0
    %1177 = vmatprep.subr.mxu0 0.0
    %1178 = vmatpush1.msra.mxu0 0.0
    %1179 = vmatprep.subr.mxu0 0.0
    %1180 = vmatpush1.msra.mxu0 0.0
    %1181 = vmatprep.mubr.f32.mxu0 0.0
    %v1182 = vand.u32 %v1009, 4294901760
    %1183 = vmatmul.mubr.f32.gmra.mrb[0].mxu0 %v1182
    %v1184 = vpop.f32.mrb[0].mxu0
    %v1185 = vadd.f32 %v1089, %v1184
    %v1186 = vpop.f32.mrb[0].mxu0
    %1187 = vmatprep.mubr.f32.mxu0 0.0
    %v1188 = vand.u32 %v1012, 4294901760
    %1189 = vmatmul.mubr.f32.gmra.mrb[0].mxu0 %v1188
    %v1190 = vpop.f32.mrb[0].mxu0
    %v1191 = vadd.f32 %v1099, %v1190
    %v1192 = vpop.f32.mrb[0].mxu0
    %1193 = vdwg.mxu0
    %1194 = vmatprep.subr.mxu0 0.0
    %v1195 = vand.u32 %v983, 4294901760
    %v1196 = vsub.f32 %v983, %v1195
    %1197 = vmatpush1.msra.mxu0 %v1196
    %1198 = vmatprep.subr.mxu0 0.0
    %v1199 = vand.u32 %v988, 4294901760
    %v1200 = vsub.f32 %v988, %v1199
    %1201 = vmatpush1.msra.mxu0 %v1200
    %1202 = vmatprep.subr.mxu0 0.0
    %v1203 = vand.u32 %v991, 4294901760
    %v1204 = vsub.f32 %v991, %v1203
    %1205 = vmatpush1.msra.mxu0 %v1204
    %1206 = vmatprep.subr.mxu0 0.0
    %1207 = vmatpush1.msra.mxu0 0.0
    %1208 = vmatprep.subr.mxu0 0.0
    %1209 = vmatpush1.msra.mxu0 0.0
    %1210 = vmatprep.subr.mxu0 0.0
    %1211 = vmatpush1.msra.mxu0 0.0
    %1212 = vmatprep.subr.mxu0 0.0
    %1213 = vmatpush1.msra.mxu0 0.0
    %1214 = vmatprep.subr.mxu0 0.0
    %1215 = vmatpush1.msra.mxu0 0.0
    %1216 = vmatprep.subr.mxu0 0.0
    %1217 = vmatpush1.msra.mxu0 0.0
    %1218 = vmatprep.subr.mxu0 0.0
    %1219 = vmatpush1.msra.mxu0 0.0
    %1220 = vmatprep.subr.mxu0 0.0
    %1221 = vmatpush1.msra.mxu0 0.0
    %1222 = vmatprep.subr.mxu0 0.0
    %1223 = vmatpush1.msra.mxu0 0.0
    %1224 = vmatprep.subr.mxu0 0.0
    %1225 = vmatpush1.msra.mxu0 0.0
    %1226 = vmatprep.subr.mxu0 0.0
    %1227 = vmatpush1.msra.mxu0 0.0
    %1228 = vmatprep.subr.mxu0 0.0
    %1229 = vmatpush1.msra.mxu0 0.0
    %1230 = vmatprep.subr.mxu0 0.0
    %1231 = vmatpush1.msra.mxu0 0.0
    %1232 = vmatprep.subr.mxu0 0.0
    %1233 = vmatpush1.msra.mxu0 0.0
    %1234 = vmatprep.subr.mxu0 0.0
    %1235 = vmatpush1.msra.mxu0 0.0
    %1236 = vmatprep.subr.mxu0 0.0
    %1237 = vmatpush1.msra.mxu0 0.0
    %1238 = vmatprep.subr.mxu0 0.0
    %1239 = vmatpush1.msra.mxu0 0.0
    %1240 = vmatprep.subr.mxu0 0.0
    %1241 = vmatpush1.msra.mxu0 0.0
    %1242 = vmatprep.subr.mxu0 0.0
    %1243 = vmatpush1.msra.mxu0 0.0
    %1244 = vmatprep.subr.mxu0 0.0
    %1245 = vmatpush1.msra.mxu0 0.0
    %1246 = vmatprep.subr.mxu0 0.0
    %1247 = vmatpush1.msra.mxu0 0.0
    %1248 = vmatprep.subr.mxu0 0.0
    %1249 = vmatpush1.msra.mxu0 0.0
    %1250 = vmatprep.subr.mxu0 0.0
    %1251 = vmatpush1.msra.mxu0 0.0
    %1252 = vmatprep.subr.mxu0 0.0
    %1253 = vmatpush1.msra.mxu0 0.0
    %1254 = vmatprep.subr.mxu0 0.0
    %1255 = vmatpush1.msra.mxu0 0.0
    %1256 = vmatprep.subr.mxu0 0.0
    %1257 = vmatpush1.msra.mxu0 0.0
    %1258 = vmatprep.subr.mxu0 0.0
    %1259 = vmatpush1.msra.mxu0 0.0
    %1260 = vmatprep.subr.mxu0 0.0
    %1261 = vmatpush1.msra.mxu0 0.0
    %1262 = vmatprep.subr.mxu0 0.0
    %1263 = vmatpush1.msra.mxu0 0.0
    %1264 = vmatprep.mubr.f32.mxu0 0.0
    %v1265 = vand.u32 %v1009, 4294901760
    %v1266 = vsub.f32 %v1009, %v1265
    %1267 = vmatmul.mubr.f32.gmra.mrb[0].mxu0 %v1266
    %v1268 = vpop.f32.mrb[0].mxu0
    %v1269 = vadd.f32 %v1185, %v1268
    %v1270 = vpop.f32.mrb[0].mxu0
    %1271 = vmatprep.mubr.f32.mxu0 0.0
    %v1272 = vand.u32 %v1012, 4294901760
    %v1273 = vsub.f32 %v1012, %v1272
    %1274 = vmatmul.mubr.f32.gmra.mrb[0].mxu0 %v1273
    %v1275 = vpop.f32.mrb[0].mxu0
    %v1276 = vadd.f32 %v1191, %v1275
    %v1277 = vpop.f32.mrb[0].mxu0
    %1278 = vdwg.mxu0
    %1279 = vmatprep.subr.mxu0 0.0
    %v1280 = vand.u32 %v983, 4294901760
    %1281 = vmatpush1.msra.mxu0 %v1280
    %1282 = vmatprep.subr.mxu0 0.0
    %v1283 = vand.u32 %v988, 4294901760
    %1284 = vmatpush1.msra.mxu0 %v1283
    %1285 = vmatprep.subr.mxu0 0.0
    %v1286 = vand.u32 %v991, 4294901760
    %1287 = vmatpush1.msra.mxu0 %v1286
    %1288 = vmatprep.subr.mxu0 0.0
    %1289 = vmatpush1.msra.mxu0 0.0
    %1290 = vmatprep.subr.mxu0 0.0
    %1291 = vmatpush1.msra.mxu0 0.0
    %1292 = vmatprep.subr.mxu0 0.0
    %1293 = vmatpush1.msra.mxu0 0.0
    %1294 = vmatprep.subr.mxu0 0.0
    %1295 = vmatpush1.msra.mxu0 0.0
    %1296 = vmatprep.subr.mxu0 0.0
    %1297 = vmatpush1.msra.mxu0 0.0
    %1298 = vmatprep.subr.mxu0 0.0
    %1299 = vmatpush1.msra.mxu0 0.0
    %1300 = vmatprep.subr.mxu0 0.0
    %1301 = vmatpush1.msra.mxu0 0.0
    %1302 = vmatprep.subr.mxu0 0.0
    %1303 = vmatpush1.msra.mxu0 0.0
    %1304 = vmatprep.subr.mxu0 0.0
    %1305 = vmatpush1.msra.mxu0 0.0
    %1306 = vmatprep.subr.mxu0 0.0
    %1307 = vmatpush1.msra.mxu0 0.0
    %1308 = vmatprep.subr.mxu0 0.0
    %1309 = vmatpush1.msra.mxu0 0.0
    %1310 = vmatprep.subr.mxu0 0.0
    %1311 = vmatpush1.msra.mxu0 0.0
    %1312 = vmatprep.subr.mxu0 0.0
    %1313 = vmatpush1.msra.mxu0 0.0
    %1314 = vmatprep.subr.mxu0 0.0
    %1315 = vmatpush1.msra.mxu0 0.0
    %1316 = vmatprep.subr.mxu0 0.0
    %1317 = vmatpush1.msra.mxu0 0.0
    %1318 = vmatprep.subr.mxu0 0.0
    %1319 = vmatpush1.msra.mxu0 0.0
    %1320 = vmatprep.subr.mxu0 0.0
    %1321 = vmatpush1.msra.mxu0 0.0
    %1322 = vmatprep.subr.mxu0 0.0
    %1323 = vmatpush1.msra.mxu0 0.0
    %1324 = vmatprep.subr.mxu0 0.0
    %1325 = vmatpush1.msra.mxu0 0.0
    %1326 = vmatprep.subr.mxu0 0.0
    %1327 = vmatpush1.msra.mxu0 0.0
    %1328 = vmatprep.subr.mxu0 0.0
    %1329 = vmatpush1.msra.mxu0 0.0
    %1330 = vmatprep.subr.mxu0 0.0
    %1331 = vmatpush1.msra.mxu0 0.0
    %1332 = vmatprep.subr.mxu0 0.0
    %1333 = vmatpush1.msra.mxu0 0.0
    %1334 = vmatprep.subr.mxu0 0.0
    %1335 = vmatpush1.msra.mxu0 0.0
    %1336 = vmatprep.subr.mxu0 0.0
    %1337 = vmatpush1.msra.mxu0 0.0
    %1338 = vmatprep.subr.mxu0 0.0
    %1339 = vmatpush1.msra.mxu0 0.0
    %1340 = vmatprep.subr.mxu0 0.0
    %1341 = vmatpush1.msra.mxu0 0.0
    %1342 = vmatprep.subr.mxu0 0.0
    %1343 = vmatpush1.msra.mxu0 0.0
    %1344 = vmatprep.subr.mxu0 0.0
    %1345 = vmatpush1.msra.mxu0 0.0
    %1346 = vmatprep.mubr.f32.mxu0 0.0
    %v1347 = vand.u32 %v1009, 4294901760
    %v1348 = vsub.f32 %v1009, %v1347
    %v1349 = vand.u32 %v1348, 4294901760
    %1350 = vmatmul.mubr.f32.gmra.mrb[0].mxu0 %v1349
    %v1351 = vpop.f32.mrb[0].mxu0
    %v1352 = vadd.f32 %v1269, %v1351
    %v1353 = vpop.f32.mrb[0].mxu0
    %1354 = vmatprep.mubr.f32.mxu0 0.0
    %v1355 = vand.u32 %v1012, 4294901760
    %v1356 = vsub.f32 %v1012, %v1355
    %v1357 = vand.u32 %v1356, 4294901760
    %1358 = vmatmul.mubr.f32.gmra.mrb[0].mxu0 %v1357
    %v1359 = vpop.f32.mrb[0].mxu0
    %v1360 = vadd.f32 %v1276, %v1359
    %v1361 = vpop.f32.mrb[0].mxu0
    %1362 = vdwg.mxu0
    %1363 = vmatprep.subr.mxu0 0.0
    %v1364 = vand.u32 %v983, 4294901760
    %v1365 = vsub.f32 %v983, %v1364
    %v1366 = vand.u32 %v1365, 4294901760
    %1367 = vmatpush1.msra.mxu0 %v1366
    %1368 = vmatprep.subr.mxu0 0.0
    %v1369 = vand.u32 %v988, 4294901760
    %v1370 = vsub.f32 %v988, %v1369
    %v1371 = vand.u32 %v1370, 4294901760
    %1372 = vmatpush1.msra.mxu0 %v1371
    %1373 = vmatprep.subr.mxu0 0.0
    %v1374 = vand.u32 %v991, 4294901760
    %v1375 = vsub.f32 %v991, %v1374
    %v1376 = vand.u32 %v1375, 4294901760
    %1377 = vmatpush1.msra.mxu0 %v1376
    %1378 = vmatprep.subr.mxu0 0.0
    %1379 = vmatpush1.msra.mxu0 0.0
    %1380 = vmatprep.subr.mxu0 0.0
    %1381 = vmatpush1.msra.mxu0 0.0
    %1382 = vmatprep.subr.mxu0 0.0
    %1383 = vmatpush1.msra.mxu0 0.0
    %1384 = vmatprep.subr.mxu0 0.0
    %1385 = vmatpush1.msra.mxu0 0.0
    %1386 = vmatprep.subr.mxu0 0.0
    %1387 = vmatpush1.msra.mxu0 0.0
    %1388 = vmatprep.subr.mxu0 0.0
    %1389 = vmatpush1.msra.mxu0 0.0
    %1390 = vmatprep.subr.mxu0 0.0
    %1391 = vmatpush1.msra.mxu0 0.0
    %1392 = vmatprep.subr.mxu0 0.0
    %1393 = vmatpush1.msra.mxu0 0.0
    %1394 = vmatprep.subr.mxu0 0.0
    %1395 = vmatpush1.msra.mxu0 0.0
    %1396 = vmatprep.subr.mxu0 0.0
    %1397 = vmatpush1.msra.mxu0 0.0
    %1398 = vmatprep.subr.mxu0 0.0
    %1399 = vmatpush1.msra.mxu0 0.0
    %1400 = vmatprep.subr.mxu0 0.0
    %1401 = vmatpush1.msra.mxu0 0.0
    %1402 = vmatprep.subr.mxu0 0.0
    %1403 = vmatpush1.msra.mxu0 0.0
    %1404 = vmatprep.subr.mxu0 0.0
    %1405 = vmatpush1.msra.mxu0 0.0
    %1406 = vmatprep.subr.mxu0 0.0
    %1407 = vmatpush1.msra.mxu0 0.0
    %1408 = vmatprep.subr.mxu0 0.0
    %1409 = vmatpush1.msra.mxu0 0.0
    %1410 = vmatprep.subr.mxu0 0.0
    %1411 = vmatpush1.msra.mxu0 0.0
    %1412 = vmatprep.subr.mxu0 0.0
    %1413 = vmatpush1.msra.mxu0 0.0
    %1414 = vmatprep.subr.mxu0 0.0
    %1415 = vmatpush1.msra.mxu0 0.0
    %1416 = vmatprep.subr.mxu0 0.0
    %1417 = vmatpush1.msra.mxu0 0.0
    %1418 = vmatprep.subr.mxu0 0.0
    %1419 = vmatpush1.msra.mxu0 0.0
    %1420 = vmatprep.subr.mxu0 0.0
    %1421 = vmatpush1.msra.mxu0 0.0
    %1422 = vmatprep.subr.mxu0 0.0
    %1423 = vmatpush1.msra.mxu0 0.0
    %1424 = vmatprep.subr.mxu0 0.0
    %1425 = vmatpush1.msra.mxu0 0.0
    %1426 = vmatprep.subr.mxu0 0.0
    %1427 = vmatpush1.msra.mxu0 0.0
    %1428 = vmatprep.subr.mxu0 0.0
    %1429 = vmatpush1.msra.mxu0 0.0
    %1430 = vmatprep.subr.mxu0 0.0
    %1431 = vmatpush1.msra.mxu0 0.0
    %1432 = vmatprep.subr.mxu0 0.0
    %1433 = vmatpush1.msra.mxu0 0.0
    %1434 = vmatprep.subr.mxu0 0.0
    %1435 = vmatpush1.msra.mxu0 0.0
    %1436 = vmatprep.mubr.f32.mxu0 0.0
    %v1437 = vand.u32 %v1009, 4294901760
    %1438 = vmatmul.mubr.f32.gmra.mrb[0].mxu0 %v1437
    %v1439 = vpop.f32.mrb[0].mxu0
    %v1440 = vadd.f32 %v1352, %v1439
    %v1441 = vpop.f32.mrb[0].mxu0
    %1442 = vmatprep.mubr.f32.mxu0 0.0
    %v1443 = vand.u32 %v1012, 4294901760
    %1444 = vmatmul.mubr.f32.gmra.mrb[0].mxu0 %v1443
    %v1445 = vpop.f32.mrb[0].mxu0
    %v1446 = vadd.f32 %v1360, %v1445
    %v1447 = vpop.f32.mrb[0].mxu0
    %1448 = vdwg.mxu0
    %1449 = vmatprep.subr.mxu0 0.0
    %v1450 = vand.u32 %v983, 4294901760
    %1451 = vmatpush1.msra.mxu0 %v1450
    %1452 = vmatprep.subr.mxu0 0.0
    %v1453 = vand.u32 %v988, 4294901760
    %1454 = vmatpush1.msra.mxu0 %v1453
    %1455 = vmatprep.subr.mxu0 0.0
    %v1456 = vand.u32 %v991, 4294901760
    %1457 = vmatpush1.msra.mxu0 %v1456
    %1458 = vmatprep.subr.mxu0 0.0
    %1459 = vmatpush1.msra.mxu0 0.0
    %1460 = vmatprep.subr.mxu0 0.0
    %1461 = vmatpush1.msra.mxu0 0.0
    %1462 = vmatprep.subr.mxu0 0.0
    %1463 = vmatpush1.msra.mxu0 0.0
    %1464 = vmatprep.subr.mxu0 0.0
    %1465 = vmatpush1.msra.mxu0 0.0
    %1466 = vmatprep.subr.mxu0 0.0
    %1467 = vmatpush1.msra.mxu0 0.0
    %1468 = vmatprep.subr.mxu0 0.0
    %1469 = vmatpush1.msra.mxu0 0.0
    %1470 = vmatprep.subr.mxu0 0.0
    %1471 = vmatpush1.msra.mxu0 0.0
    %1472 = vmatprep.subr.mxu0 0.0
    %1473 = vmatpush1.msra.mxu0 0.0
    %1474 = vmatprep.subr.mxu0 0.0
    %1475 = vmatpush1.msra.mxu0 0.0
    %1476 = vmatprep.subr.mxu0 0.0
    %1477 = vmatpush1.msra.mxu0 0.0
    %1478 = vmatprep.subr.mxu0 0.0
    %1479 = vmatpush1.msra.mxu0 0.0
    %1480 = vmatprep.subr.mxu0 0.0
    %1481 = vmatpush1.msra.mxu0 0.0
    %1482 = vmatprep.subr.mxu0 0.0
    %1483 = vmatpush1.msra.mxu0 0.0
    %1484 = vmatprep.subr.mxu0 0.0
    %1485 = vmatpush1.msra.mxu0 0.0
    %1486 = vmatprep.subr.mxu0 0.0
    %1487 = vmatpush1.msra.mxu0 0.0
    %1488 = vmatprep.subr.mxu0 0.0
    %1489 = vmatpush1.msra.mxu0 0.0
    %1490 = vmatprep.subr.mxu0 0.0
    %1491 = vmatpush1.msra.mxu0 0.0
    %1492 = vmatprep.subr.mxu0 0.0
    %1493 = vmatpush1.msra.mxu0 0.0
    %1494 = vmatprep.subr.mxu0 0.0
    %1495 = vmatpush1.msra.mxu0 0.0
    %1496 = vmatprep.subr.mxu0 0.0
    %1497 = vmatpush1.msra.mxu0 0.0
    %1498 = vmatprep.subr.mxu0 0.0
    %1499 = vmatpush1.msra.mxu0 0.0
    %1500 = vmatprep.subr.mxu0 0.0
    %1501 = vmatpush1.msra.mxu0 0.0
    %1502 = vmatprep.subr.mxu0 0.0
    %1503 = vmatpush1.msra.mxu0 0.0
    %1504 = vmatprep.subr.mxu0 0.0
    %1505 = vmatpush1.msra.mxu0 0.0
    %1506 = vmatprep.subr.mxu0 0.0
    %1507 = vmatpush1.msra.mxu0 0.0
    %1508 = vmatprep.subr.mxu0 0.0
    %1509 = vmatpush1.msra.mxu0 0.0
    %1510 = vmatprep.subr.mxu0 0.0
    %1511 = vmatpush1.msra.mxu0 0.0
    %1512 = vmatprep.subr.mxu0 0.0
    %1513 = vmatpush1.msra.mxu0 0.0
    %1514 = vmatprep.subr.mxu0 0.0
    %1515 = vmatpush1.msra.mxu0 0.0
    %1516 = vmatprep.mubr.f32.mxu0 0.0
    %v1517 = vand.u32 %v1009, 4294901760
    %1518 = vmatmul.mubr.f32.gmra.mrb[0].mxu0 %v1517
    %v1519 = vpop.f32.mrb[0].mxu0
    %v1520 = vadd.f32 %v1440, %v1519
    %v1521 = vpop.f32.mrb[0].mxu0
    %1522 = vmatprep.mubr.f32.mxu0 0.0
    %v1523 = vand.u32 %v1012, 4294901760
    %1524 = vmatmul.mubr.f32.gmra.mrb[0].mxu0 %v1523
    %v1525 = vpop.f32.mrb[0].mxu0
    %v1526 = vadd.f32 %v1446, %v1525
    %v1527 = vpop.f32.mrb[0].mxu0
    %1528 = vdwg.mxu0
    %v1529 = vmax.f32 %v1520, 0.0
    %v1530 = vmax.f32 %v1526, 0.0
    %v1531 = vld [vmem:[#allocation5 + $0x18] sm:$0xff]
    %vm1532 = vcmask 64512
    %v1534 = vsel %vm1532, %v1529, 0
    %v1537 = vsel %vm1532, %v1530, 0
    %1539 = vmatprep.subr.mxu0 0.0
    %v1540 = vand.u32 %v1531, 4294901760
    %1541 = vmatpush1.msra.mxu0 %v1540
    %1542 = vmatprep.subr.mxu0 0.0
    %1543 = vmatpush1.msra.mxu0 0.0
    %1544 = vmatprep.subr.mxu0 0.0
    %1545 = vmatpush1.msra.mxu0 0.0
    %1546 = vmatprep.subr.mxu0 0.0
    %1547 = vmatpush1.msra.mxu0 0.0
    %1548 = vmatprep.subr.mxu0 0.0
    %1549 = vmatpush1.msra.mxu0 0.0
    %1550 = vmatprep.subr.mxu0 0.0
    %1551 = vmatpush1.msra.mxu0 0.0
    %1552 = vmatprep.subr.mxu0 0.0
    %1553 = vmatpush1.msra.mxu0 0.0
    %1554 = vmatprep.subr.mxu0 0.0
    %1555 = vmatpush1.msra.mxu0 0.0
    %1556 = vmatprep.subr.mxu0 0.0
    %1557 = vmatpush1.msra.mxu0 0.0
    %1558 = vmatprep.subr.mxu0 0.0
    %1559 = vmatpush1.msra.mxu0 0.0
    %1560 = vmatprep.subr.mxu0 0.0
    %1561 = vmatpush1.msra.mxu0 0.0
    %1562 = vmatprep.subr.mxu0 0.0
    %1563 = vmatpush1.msra.mxu0 0.0
    %1564 = vmatprep.subr.mxu0 0.0
    %1565 = vmatpush1.msra.mxu0 0.0
    %1566 = vmatprep.subr.mxu0 0.0
    %1567 = vmatpush1.msra.mxu0 0.0
    %1568 = vmatprep.subr.mxu0 0.0
    %1569 = vmatpush1.msra.mxu0 0.0
    %1570 = vmatprep.subr.mxu0 0.0
    %1571 = vmatpush1.msra.mxu0 0.0
    %1572 = vmatprep.subr.mxu0 0.0
    %1573 = vmatpush1.msra.mxu0 0.0
    %1574 = vmatprep.subr.mxu0 0.0
    %1575 = vmatpush1.msra.mxu0 0.0
    %1576 = vmatprep.subr.mxu0 0.0
    %1577 = vmatpush1.msra.mxu0 0.0
    %1578 = vmatprep.subr.mxu0 0.0
    %1579 = vmatpush1.msra.mxu0 0.0
    %1580 = vmatprep.subr.mxu0 0.0
    %1581 = vmatpush1.msra.mxu0 0.0
    %1582 = vmatprep.subr.mxu0 0.0
    %1583 = vmatpush1.msra.mxu0 0.0
    %1584 = vmatprep.subr.mxu0 0.0
    %1585 = vmatpush1.msra.mxu0 0.0
    %1586 = vmatprep.subr.mxu0 0.0
    %1587 = vmatpush1.msra.mxu0 0.0
    %1588 = vmatprep.subr.mxu0 0.0
    %1589 = vmatpush1.msra.mxu0 0.0
    %1590 = vmatprep.subr.mxu0 0.0
    %1591 = vmatpush1.msra.mxu0 0.0
    %1592 = vmatprep.subr.mxu0 0.0
    %1593 = vmatpush1.msra.mxu0 0.0
    %1594 = vmatprep.subr.mxu0 0.0
    %1595 = vmatpush1.msra.mxu0 0.0
    %1596 = vmatprep.subr.mxu0 0.0
    %1597 = vmatpush1.msra.mxu0 0.0
    %1598 = vmatprep.subr.mxu0 0.0
    %1599 = vmatpush1.msra.mxu0 0.0
    %1600 = vmatprep.subr.mxu0 0.0
    %1601 = vmatpush1.msra.mxu0 0.0
    %1602 = vmatprep.subr.mxu0 0.0
    %1603 = vmatpush1.msra.mxu0 0.0
    %1604 = vmatprep.mubr.f32.mxu0 0.0
    %v1605 = vand.u32 %v1534, 4294901760
    %v1606 = vsub.f32 %v1534, %v1605
    %v1607 = vand.u32 %v1606, 4294901760
    %v1608 = vsub.f32 %v1606, %v1607
    %v1609 = vand.u32 %v1608, 4294901760
    %1610 = vmatmul.mubr.f32.gmra.mrb[0].mxu0 %v1609
    %v1611 = vpop.f32.mrb[0].mxu0
    %v1612 = vadd.f32 0.0, %v1611
    %v1613 = vpop.f32.mrb[0].mxu0
    %1614 = vmatprep.mubr.f32.mxu0 0.0
    %v1615 = vand.u32 %v1537, 4294901760
    %v1616 = vsub.f32 %v1537, %v1615
    %v1617 = vand.u32 %v1616, 4294901760
    %v1618 = vsub.f32 %v1616, %v1617
    %v1619 = vand.u32 %v1618, 4294901760
    %1620 = vmatmul.mubr.f32.gmra.mrb[0].mxu0 %v1619
    %v1621 = vpop.f32.mrb[0].mxu0
    %v1622 = vadd.f32 0.0, %v1621
    %v1623 = vpop.f32.mrb[0].mxu0
    %1624 = vdwg.mxu0
    %1625 = vmatprep.subr.mxu0 0.0
    %v1626 = vand.u32 %v1531, 4294901760
    %v1627 = vsub.f32 %v1531, %v1626
    %v1628 = vand.u32 %v1627, 4294901760
    %v1629 = vsub.f32 %v1627, %v1628
    %v1630 = vand.u32 %v1629, 4294901760
    %1631 = vmatpush1.msra.mxu0 %v1630
    %1632 = vmatprep.subr.mxu0 0.0
    %1633 = vmatpush1.msra.mxu0 0.0
    %1634 = vmatprep.subr.mxu0 0.0
    %1635 = vmatpush1.msra.mxu0 0.0
    %1636 = vmatprep.subr.mxu0 0.0
    %1637 = vmatpush1.msra.mxu0 0.0
    %1638 = vmatprep.subr.mxu0 0.0
    %1639 = vmatpush1.msra.mxu0 0.0
    %1640 = vmatprep.subr.mxu0 0.0
    %1641 = vmatpush1.msra.mxu0 0.0
    %1642 = vmatprep.subr.mxu0 0.0
    %1643 = vmatpush1.msra.mxu0 0.0
    %1644 = vmatprep.subr.mxu0 0.0
    %1645 = vmatpush1.msra.mxu0 0.0
    %1646 = vmatprep.subr.mxu0 0.0
    %1647 = vmatpush1.msra.mxu0 0.0
    %1648 = vmatprep.subr.mxu0 0.0
    %1649 = vmatpush1.msra.mxu0 0.0
    %1650 = vmatprep.subr.mxu0 0.0
    %1651 = vmatpush1.msra.mxu0 0.0
    %1652 = vmatprep.subr.mxu0 0.0
    %1653 = vmatpush1.msra.mxu0 0.0
    %1654 = vmatprep.subr.mxu0 0.0
    %1655 = vmatpush1.msra.mxu0 0.0
    %1656 = vmatprep.subr.mxu0 0.0
    %1657 = vmatpush1.msra.mxu0 0.0
    %1658 = vmatprep.subr.mxu0 0.0
    %1659 = vmatpush1.msra.mxu0 0.0
    %1660 = vmatprep.subr.mxu0 0.0
    %1661 = vmatpush1.msra.mxu0 0.0
    %1662 = vmatprep.subr.mxu0 0.0
    %1663 = vmatpush1.msra.mxu0 0.0
    %1664 = vmatprep.subr.mxu0 0.0
    %1665 = vmatpush1.msra.mxu0 0.0
    %1666 = vmatprep.subr.mxu0 0.0
    %1667 = vmatpush1.msra.mxu0 0.0
    %1668 = vmatprep.subr.mxu0 0.0
    %1669 = vmatpush1.msra.mxu0 0.0
    %1670 = vmatprep.subr.mxu0 0.0
    %1671 = vmatpush1.msra.mxu0 0.0
    %1672 = vmatprep.subr.mxu0 0.0
    %1673 = vmatpush1.msra.mxu0 0.0
    %1674 = vmatprep.subr.mxu0 0.0
    %1675 = vmatpush1.msra.mxu0 0.0
    %1676 = vmatprep.subr.mxu0 0.0
    %1677 = vmatpush1.msra.mxu0 0.0
    %1678 = vmatprep.subr.mxu0 0.0
    %1679 = vmatpush1.msra.mxu0 0.0
    %1680 = vmatprep.subr.mxu0 0.0
    %1681 = vmatpush1.msra.mxu0 0.0
    %1682 = vmatprep.subr.mxu0 0.0
    %1683 = vmatpush1.msra.mxu0 0.0
    %1684 = vmatprep.subr.mxu0 0.0
    %1685 = vmatpush1.msra.mxu0 0.0
    %1686 = vmatprep.subr.mxu0 0.0
    %1687 = vmatpush1.msra.mxu0 0.0
    %1688 = vmatprep.subr.mxu0 0.0
    %1689 = vmatpush1.msra.mxu0 0.0
    %1690 = vmatprep.subr.mxu0 0.0
    %1691 = vmatpush1.msra.mxu0 0.0
    %1692 = vmatprep.subr.mxu0 0.0
    %1693 = vmatpush1.msra.mxu0 0.0
    %1694 = vmatprep.mubr.f32.mxu0 0.0
    %v1695 = vand.u32 %v1534, 4294901760
    %1696 = vmatmul.mubr.f32.gmra.mrb[0].mxu0 %v1695
    %v1697 = vpop.f32.mrb[0].mxu0
    %v1698 = vadd.f32 %v1612, %v1697
    %v1699 = vpop.f32.mrb[0].mxu0
    %1700 = vmatprep.mubr.f32.mxu0 0.0
    %v1701 = vand.u32 %v1537, 4294901760
    %1702 = vmatmul.mubr.f32.gmra.mrb[0].mxu0 %v1701
    %v1703 = vpop.f32.mrb[0].mxu0
    %v1704 = vadd.f32 %v1622, %v1703
    %v1705 = vpop.f32.mrb[0].mxu0
    %1706 = vdwg.mxu0
    %1707 = vmatprep.subr.mxu0 0.0
    %v1708 = vand.u32 %v1531, 4294901760
    %v1709 = vsub.f32 %v1531, %v1708
    %1710 = vmatpush1.msra.mxu0 %v1709
    %1711 = vmatprep.subr.mxu0 0.0
    %1712 = vmatpush1.msra.mxu0 0.0
    %1713 = vmatprep.subr.mxu0 0.0
    %1714 = vmatpush1.msra.mxu0 0.0
    %1715 = vmatprep.subr.mxu0 0.0
    %1716 = vmatpush1.msra.mxu0 0.0
    %1717 = vmatprep.subr.mxu0 0.0
    %1718 = vmatpush1.msra.mxu0 0.0
    %1719 = vmatprep.subr.mxu0 0.0
    %1720 = vmatpush1.msra.mxu0 0.0
    %1721 = vmatprep.subr.mxu0 0.0
    %1722 = vmatpush1.msra.mxu0 0.0
    %1723 = vmatprep.subr.mxu0 0.0
    %1724 = vmatpush1.msra.mxu0 0.0
    %1725 = vmatprep.subr.mxu0 0.0
    %1726 = vmatpush1.msra.mxu0 0.0
    %1727 = vmatprep.subr.mxu0 0.0
    %1728 = vmatpush1.msra.mxu0 0.0
    %1729 = vmatprep.subr.mxu0 0.0
    %1730 = vmatpush1.msra.mxu0 0.0
    %1731 = vmatprep.subr.mxu0 0.0
    %1732 = vmatpush1.msra.mxu0 0.0
    %1733 = vmatprep.subr.mxu0 0.0
    %1734 = vmatpush1.msra.mxu0 0.0
    %1735 = vmatprep.subr.mxu0 0.0
    %1736 = vmatpush1.msra.mxu0 0.0
    %1737 = vmatprep.subr.mxu0 0.0
    %1738 = vmatpush1.msra.mxu0 0.0
    %1739 = vmatprep.subr.mxu0 0.0
    %1740 = vmatpush1.msra.mxu0 0.0
    %1741 = vmatprep.subr.mxu0 0.0
    %1742 = vmatpush1.msra.mxu0 0.0
    %1743 = vmatprep.subr.mxu0 0.0
    %1744 = vmatpush1.msra.mxu0 0.0
    %1745 = vmatprep.subr.mxu0 0.0
    %1746 = vmatpush1.msra.mxu0 0.0
    %1747 = vmatprep.subr.mxu0 0.0
    %1748 = vmatpush1.msra.mxu0 0.0
    %1749 = vmatprep.subr.mxu0 0.0
    %1750 = vmatpush1.msra.mxu0 0.0
    %1751 = vmatprep.subr.mxu0 0.0
    %1752 = vmatpush1.msra.mxu0 0.0
    %1753 = vmatprep.subr.mxu0 0.0
    %1754 = vmatpush1.msra.mxu0 0.0
    %1755 = vmatprep.subr.mxu0 0.0
    %1756 = vmatpush1.msra.mxu0 0.0
    %1757 = vmatprep.subr.mxu0 0.0
    %1758 = vmatpush1.msra.mxu0 0.0
    %1759 = vmatprep.subr.mxu0 0.0
    %1760 = vmatpush1.msra.mxu0 0.0
    %1761 = vmatprep.subr.mxu0 0.0
    %1762 = vmatpush1.msra.mxu0 0.0
    %1763 = vmatprep.subr.mxu0 0.0
    %1764 = vmatpush1.msra.mxu0 0.0
    %1765 = vmatprep.subr.mxu0 0.0
    %1766 = vmatpush1.msra.mxu0 0.0
    %1767 = vmatprep.subr.mxu0 0.0
    %1768 = vmatpush1.msra.mxu0 0.0
    %1769 = vmatprep.subr.mxu0 0.0
    %1770 = vmatpush1.msra.mxu0 0.0
    %1771 = vmatprep.subr.mxu0 0.0
    %1772 = vmatpush1.msra.mxu0 0.0
    %1773 = vmatprep.mubr.f32.mxu0 0.0
    %v1774 = vand.u32 %v1534, 4294901760
    %v1775 = vsub.f32 %v1534, %v1774
    %1776 = vmatmul.mubr.f32.gmra.mrb[0].mxu0 %v1775
    %v1777 = vpop.f32.mrb[0].mxu0
    %v1778 = vadd.f32 %v1698, %v1777
    %v1779 = vpop.f32.mrb[0].mxu0
    %1780 = vmatprep.mubr.f32.mxu0 0.0
    %v1781 = vand.u32 %v1537, 4294901760
    %v1782 = vsub.f32 %v1537, %v1781
    %1783 = vmatmul.mubr.f32.gmra.mrb[0].mxu0 %v1782
    %v1784 = vpop.f32.mrb[0].mxu0
    %v1785 = vadd.f32 %v1704, %v1784
    %v1786 = vpop.f32.mrb[0].mxu0
    %1787 = vdwg.mxu0
    %1788 = vmatprep.subr.mxu0 0.0
    %v1789 = vand.u32 %v1531, 4294901760
    %1790 = vmatpush1.msra.mxu0 %v1789
    %1791 = vmatprep.subr.mxu0 0.0
    %1792 = vmatpush1.msra.mxu0 0.0
    %1793 = vmatprep.subr.mxu0 0.0
    %1794 = vmatpush1.msra.mxu0 0.0
    %1795 = vmatprep.subr.mxu0 0.0
    %1796 = vmatpush1.msra.mxu0 0.0
    %1797 = vmatprep.subr.mxu0 0.0
    %1798 = vmatpush1.msra.mxu0 0.0
    %1799 = vmatprep.subr.mxu0 0.0
    %1800 = vmatpush1.msra.mxu0 0.0
    %1801 = vmatprep.subr.mxu0 0.0
    %1802 = vmatpush1.msra.mxu0 0.0
    %1803 = vmatprep.subr.mxu0 0.0
    %1804 = vmatpush1.msra.mxu0 0.0
    %1805 = vmatprep.subr.mxu0 0.0
    %1806 = vmatpush1.msra.mxu0 0.0
    %1807 = vmatprep.subr.mxu0 0.0
    %1808 = vmatpush1.msra.mxu0 0.0
    %1809 = vmatprep.subr.mxu0 0.0
    %1810 = vmatpush1.msra.mxu0 0.0
    %1811 = vmatprep.subr.mxu0 0.0
    %1812 = vmatpush1.msra.mxu0 0.0
    %1813 = vmatprep.subr.mxu0 0.0
    %1814 = vmatpush1.msra.mxu0 0.0
    %1815 = vmatprep.subr.mxu0 0.0
    %1816 = vmatpush1.msra.mxu0 0.0
    %1817 = vmatprep.subr.mxu0 0.0
    %1818 = vmatpush1.msra.mxu0 0.0
    %1819 = vmatprep.subr.mxu0 0.0
    %1820 = vmatpush1.msra.mxu0 0.0
    %1821 = vmatprep.subr.mxu0 0.0
    %1822 = vmatpush1.msra.mxu0 0.0
    %1823 = vmatprep.subr.mxu0 0.0
    %1824 = vmatpush1.msra.mxu0 0.0
    %1825 = vmatprep.subr.mxu0 0.0
    %1826 = vmatpush1.msra.mxu0 0.0
    %1827 = vmatprep.subr.mxu0 0.0
    %1828 = vmatpush1.msra.mxu0 0.0
    %1829 = vmatprep.subr.mxu0 0.0
    %1830 = vmatpush1.msra.mxu0 0.0
    %1831 = vmatprep.subr.mxu0 0.0
    %1832 = vmatpush1.msra.mxu0 0.0
    %1833 = vmatprep.subr.mxu0 0.0
    %1834 = vmatpush1.msra.mxu0 0.0
    %1835 = vmatprep.subr.mxu0 0.0
    %1836 = vmatpush1.msra.mxu0 0.0
    %1837 = vmatprep.subr.mxu0 0.0
    %1838 = vmatpush1.msra.mxu0 0.0
    %1839 = vmatprep.subr.mxu0 0.0
    %1840 = vmatpush1.msra.mxu0 0.0
    %1841 = vmatprep.subr.mxu0 0.0
    %1842 = vmatpush1.msra.mxu0 0.0
    %1843 = vmatprep.subr.mxu0 0.0
    %1844 = vmatpush1.msra.mxu0 0.0
    %1845 = vmatprep.subr.mxu0 0.0
    %1846 = vmatpush1.msra.mxu0 0.0
    %1847 = vmatprep.subr.mxu0 0.0
    %1848 = vmatpush1.msra.mxu0 0.0
    %1849 = vmatprep.subr.mxu0 0.0
    %1850 = vmatpush1.msra.mxu0 0.0
    %1851 = vmatprep.subr.mxu0 0.0
    %1852 = vmatpush1.msra.mxu0 0.0
    %1853 = vmatprep.mubr.f32.mxu0 0.0
    %v1854 = vand.u32 %v1534, 4294901760
    %v1855 = vsub.f32 %v1534, %v1854
    %v1856 = vand.u32 %v1855, 4294901760
    %1857 = vmatmul.mubr.f32.gmra.mrb[0].mxu0 %v1856
    %v1858 = vpop.f32.mrb[0].mxu0
    %v1859 = vadd.f32 %v1778, %v1858
    %v1860 = vpop.f32.mrb[0].mxu0
    %1861 = vmatprep.mubr.f32.mxu0 0.0
    %v1862 = vand.u32 %v1537, 4294901760
    %v1863 = vsub.f32 %v1537, %v1862
    %v1864 = vand.u32 %v1863, 4294901760
    %1865 = vmatmul.mubr.f32.gmra.mrb[0].mxu0 %v1864
    %v1866 = vpop.f32.mrb[0].mxu0
    %v1867 = vadd.f32 %v1785, %v1866
    %v1868 = vpop.f32.mrb[0].mxu0
    %1869 = vdwg.mxu0
    %1870 = vmatprep.subr.mxu0 0.0
    %v1871 = vand.u32 %v1531, 4294901760
    %v1872 = vsub.f32 %v1531, %v1871
    %v1873 = vand.u32 %v1872, 4294901760
    %1874 = vmatpush1.msra.mxu0 %v1873
    %1875 = vmatprep.subr.mxu0 0.0
    %1876 = vmatpush1.msra.mxu0 0.0
    %1877 = vmatprep.subr.mxu0 0.0
    %1878 = vmatpush1.msra.mxu0 0.0
    %1879 = vmatprep.subr.mxu0 0.0
    %1880 = vmatpush1.msra.mxu0 0.0
    %1881 = vmatprep.subr.mxu0 0.0
    %1882 = vmatpush1.msra.mxu0 0.0
    %1883 = vmatprep.subr.mxu0 0.0
    %1884 = vmatpush1.msra.mxu0 0.0
    %1885 = vmatprep.subr.mxu0 0.0
    %1886 = vmatpush1.msra.mxu0 0.0
    %1887 = vmatprep.subr.mxu0 0.0
    %1888 = vmatpush1.msra.mxu0 0.0
    %1889 = vmatprep.subr.mxu0 0.0
    %1890 = vmatpush1.msra.mxu0 0.0
    %1891 = vmatprep.subr.mxu0 0.0
    %1892 = vmatpush1.msra.mxu0 0.0
    %1893 = vmatprep.subr.mxu0 0.0
    %1894 = vmatpush1.msra.mxu0 0.0
    %1895 = vmatprep.subr.mxu0 0.0
    %1896 = vmatpush1.msra.mxu0 0.0
    %1897 = vmatprep.subr.mxu0 0.0
    %1898 = vmatpush1.msra.mxu0 0.0
    %1899 = vmatprep.subr.mxu0 0.0
    %1900 = vmatpush1.msra.mxu0 0.0
    %1901 = vmatprep.subr.mxu0 0.0
    %1902 = vmatpush1.msra.mxu0 0.0
    %1903 = vmatprep.subr.mxu0 0.0
    %1904 = vmatpush1.msra.mxu0 0.0
    %1905 = vmatprep.subr.mxu0 0.0
    %1906 = vmatpush1.msra.mxu0 0.0
    %1907 = vmatprep.subr.mxu0 0.0
    %1908 = vmatpush1.msra.mxu0 0.0
    %1909 = vmatprep.subr.mxu0 0.0
    %1910 = vmatpush1.msra.mxu0 0.0
    %1911 = vmatprep.subr.mxu0 0.0
    %1912 = vmatpush1.msra.mxu0 0.0
    %1913 = vmatprep.subr.mxu0 0.0
    %1914 = vmatpush1.msra.mxu0 0.0
    %1915 = vmatprep.subr.mxu0 0.0
    %1916 = vmatpush1.msra.mxu0 0.0
    %1917 = vmatprep.subr.mxu0 0.0
    %1918 = vmatpush1.msra.mxu0 0.0
    %1919 = vmatprep.subr.mxu0 0.0
    %1920 = vmatpush1.msra.mxu0 0.0
    %1921 = vmatprep.subr.mxu0 0.0
    %1922 = vmatpush1.msra.mxu0 0.0
    %1923 = vmatprep.subr.mxu0 0.0
    %1924 = vmatpush1.msra.mxu0 0.0
    %1925 = vmatprep.subr.mxu0 0.0
    %1926 = vmatpush1.msra.mxu0 0.0
    %1927 = vmatprep.subr.mxu0 0.0
    %1928 = vmatpush1.msra.mxu0 0.0
    %1929 = vmatprep.subr.mxu0 0.0
    %1930 = vmatpush1.msra.mxu0 0.0
    %1931 = vmatprep.subr.mxu0 0.0
    %1932 = vmatpush1.msra.mxu0 0.0
    %1933 = vmatprep.subr.mxu0 0.0
    %1934 = vmatpush1.msra.mxu0 0.0
    %1935 = vmatprep.subr.mxu0 0.0
    %1936 = vmatpush1.msra.mxu0 0.0
    %1937 = vmatprep.mubr.f32.mxu0 0.0
    %v1938 = vand.u32 %v1534, 4294901760
    %1939 = vmatmul.mubr.f32.gmra.mrb[0].mxu0 %v1938
    %v1940 = vpop.f32.mrb[0].mxu0
    %v1941 = vadd.f32 %v1859, %v1940
    %v1942 = vpop.f32.mrb[0].mxu0
    %1943 = vmatprep.mubr.f32.mxu0 0.0
    %v1944 = vand.u32 %v1537, 4294901760
    %1945 = vmatmul.mubr.f32.gmra.mrb[0].mxu0 %v1944
    %v1946 = vpop.f32.mrb[0].mxu0
    %v1947 = vadd.f32 %v1867, %v1946
    %v1948 = vpop.f32.mrb[0].mxu0
    %1949 = vdwg.mxu0
    %1950 = vmatprep.subr.mxu0 0.0
    %v1951 = vand.u32 %v1531, 4294901760
    %1952 = vmatpush1.msra.mxu0 %v1951
    %1953 = vmatprep.subr.mxu0 0.0
    %1954 = vmatpush1.msra.mxu0 0.0
    %1955 = vmatprep.subr.mxu0 0.0
    %1956 = vmatpush1.msra.mxu0 0.0
    %1957 = vmatprep.subr.mxu0 0.0
    %1958 = vmatpush1.msra.mxu0 0.0
    %1959 = vmatprep.subr.mxu0 0.0
    %1960 = vmatpush1.msra.mxu0 0.0
    %1961 = vmatprep.subr.mxu0 0.0
    %1962 = vmatpush1.msra.mxu0 0.0
    %1963 = vmatprep.subr.mxu0 0.0
    %1964 = vmatpush1.msra.mxu0 0.0
    %1965 = vmatprep.subr.mxu0 0.0
    %1966 = vmatpush1.msra.mxu0 0.0
    %1967 = vmatprep.subr.mxu0 0.0
    %1968 = vmatpush1.msra.mxu0 0.0
    %1969 = vmatprep.subr.mxu0 0.0
    %1970 = vmatpush1.msra.mxu0 0.0
    %1971 = vmatprep.subr.mxu0 0.0
    %1972 = vmatpush1.msra.mxu0 0.0
    %1973 = vmatprep.subr.mxu0 0.0
    %1974 = vmatpush1.msra.mxu0 0.0
    %1975 = vmatprep.subr.mxu0 0.0
    %1976 = vmatpush1.msra.mxu0 0.0
    %1977 = vmatprep.subr.mxu0 0.0
    %1978 = vmatpush1.msra.mxu0 0.0
    %1979 = vmatprep.subr.mxu0 0.0
    %1980 = vmatpush1.msra.mxu0 0.0
    %1981 = vmatprep.subr.mxu0 0.0
    %1982 = vmatpush1.msra.mxu0 0.0
    %1983 = vmatprep.subr.mxu0 0.0
    %1984 = vmatpush1.msra.mxu0 0.0
    %1985 = vmatprep.subr.mxu0 0.0
    %1986 = vmatpush1.msra.mxu0 0.0
    %1987 = vmatprep.subr.mxu0 0.0
    %1988 = vmatpush1.msra.mxu0 0.0
    %1989 = vmatprep.subr.mxu0 0.0
    %1990 = vmatpush1.msra.mxu0 0.0
    %1991 = vmatprep.subr.mxu0 0.0
    %1992 = vmatpush1.msra.mxu0 0.0
    %1993 = vmatprep.subr.mxu0 0.0
    %1994 = vmatpush1.msra.mxu0 0.0
    %1995 = vmatprep.subr.mxu0 0.0
    %1996 = vmatpush1.msra.mxu0 0.0
    %1997 = vmatprep.subr.mxu0 0.0
    %1998 = vmatpush1.msra.mxu0 0.0
    %1999 = vmatprep.subr.mxu0 0.0
    %2000 = vmatpush1.msra.mxu0 0.0
    %2001 = vmatprep.subr.mxu0 0.0
    %2002 = vmatpush1.msra.mxu0 0.0
    %2003 = vmatprep.subr.mxu0 0.0
    %2004 = vmatpush1.msra.mxu0 0.0
    %2005 = vmatprep.subr.mxu0 0.0
    %2006 = vmatpush1.msra.mxu0 0.0
    %2007 = vmatprep.subr.mxu0 0.0
    %2008 = vmatpush1.msra.mxu0 0.0
    %2009 = vmatprep.subr.mxu0 0.0
    %2010 = vmatpush1.msra.mxu0 0.0
    %2011 = vmatprep.subr.mxu0 0.0
    %2012 = vmatpush1.msra.mxu0 0.0
    %2013 = vmatprep.subr.mxu0 0.0
    %2014 = vmatpush1.msra.mxu0 0.0
    %2015 = vmatprep.mubr.f32.mxu0 0.0
    %v2016 = vand.u32 %v1534, 4294901760
    %2017 = vmatmul.mubr.f32.gmra.mrb[0].mxu0 %v2016
    %v2018 = vpop.f32.mrb[0].mxu0
    %v2019 = vadd.f32 %v1941, %v2018
    %v2020 = vpop.f32.mrb[0].mxu0
    %2021 = vmatprep.mubr.f32.mxu0 0.0
    %v2022 = vand.u32 %v1537, 4294901760
    %2023 = vmatmul.mubr.f32.gmra.mrb[0].mxu0 %v2022
    %v2024 = vpop.f32.mrb[0].mxu0
    %v2025 = vadd.f32 %v1947, %v2024
    %v2026 = vpop.f32.mrb[0].mxu0
    %2027 = vdwg.mxu0
    %2030 = vrot.lane.b32.xlu0 %v2019, 120
    %v2031 = vpop.permute.xlu0 %2030
    %2032 = vrot.lane.b32.xlu0 %v2025, 120
    %v2033 = vpop.permute.xlu0 %2032
    %v2036 = vld [vmem:[#allocation5 + $0x20] sm:$0xff]
    %v2037 = vld [vmem:[#allocation5 + $0x50] sm:$0xff]
    %2038 = vset.pattern.permute.xlu0 3
    %2039 = vperm.xlu0 %2038, %v995
    %v2040 = vpop.permute.xlu0 %2039
    %2042 = vset.pattern.permute.xlu0 3
    %2043 = vperm.xlu0 %2042, %v996
    %v2044 = vpop.permute.xlu0 %2043
    %vm2046 = vcmask 457728
    %v2048 = vsel %vm2046, %v2036, 0
    %v2051 = vsel %vm2046, %v2037, 0
    %2053 = vmatprep.subr.mxu0 0.0
    %v2054 = vand.u32 %v2019, 4294901760
    %2055 = vmatpush1.msra.mxu0 %v2054
    %2056 = vmatprep.subr.mxu0 0.0
    %v2057 = vand.u32 %v2025, 4294901760
    %2058 = vmatpush1.msra.mxu0 %v2057
    %2059 = vmatprep.subr.mxu0 0.0
    %v2060 = vand.u32 %v1529, 4294901760
    %2061 = vmatpush1.msra.mxu0 %v2060
    %2062 = vmatprep.subr.mxu0 0.0
    %v2063 = vand.u32 %v1530, 4294901760
    %2064 = vmatpush1.msra.mxu0 %v2063
    %2065 = vmatprep.subr.mxu0 0.0
    %v2066 = vand.u32 %v2031, 4294901760
    %2067 = vmatpush1.msra.mxu0 %v2066
    %2068 = vmatprep.subr.mxu0 0.0
    %v2069 = vand.u32 %v2033, 4294901760
    %2070 = vmatpush1.msra.mxu0 %v2069
    %2071 = vmatprep.subr.mxu0 0.0
    %v2072 = vand.u32 %v521, 4294901760
    %2073 = vmatpush1.msra.mxu0 %v2072
    %2074 = vmatprep.subr.mxu0 0.0
    %2075 = vmatpush1.msra.mxu0 0.0
    %2076 = vmatprep.subr.mxu0 0.0
    %2077 = vmatpush1.msra.mxu0 0.0
    %2078 = vmatprep.subr.mxu0 0.0
    %2079 = vmatpush1.msra.mxu0 0.0
    %2080 = vmatprep.subr.mxu0 0.0
    %2081 = vmatpush1.msra.mxu0 0.0
    %2082 = vmatprep.subr.mxu0 0.0
    %2083 = vmatpush1.msra.mxu0 0.0
    %2084 = vmatprep.subr.mxu0 0.0
    %2085 = vmatpush1.msra.mxu0 0.0
    %2086 = vmatprep.subr.mxu0 0.0
    %2087 = vmatpush1.msra.mxu0 0.0
    %2088 = vmatprep.subr.mxu0 0.0
    %2089 = vmatpush1.msra.mxu0 0.0
    %2090 = vmatprep.subr.mxu0 0.0
    %2091 = vmatpush1.msra.mxu0 0.0
    %2092 = vmatprep.subr.mxu0 0.0
    %2093 = vmatpush1.msra.mxu0 0.0
    %2094 = vmatprep.subr.mxu0 0.0
    %2095 = vmatpush1.msra.mxu0 0.0
    %2096 = vmatprep.subr.mxu0 0.0
    %2097 = vmatpush1.msra.mxu0 0.0
    %2098 = vmatprep.subr.mxu0 0.0
    %2099 = vmatpush1.msra.mxu0 0.0
    %2100 = vmatprep.subr.mxu0 0.0
    %2101 = vmatpush1.msra.mxu0 0.0
    %2102 = vmatprep.subr.mxu0 0.0
    %2103 = vmatpush1.msra.mxu0 0.0
    %2104 = vmatprep.subr.mxu0 0.0
    %2105 = vmatpush1.msra.mxu0 0.0
    %2106 = vmatprep.subr.mxu0 0.0
    %2107 = vmatpush1.msra.mxu0 0.0
    %2108 = vmatprep.subr.mxu0 0.0
    %2109 = vmatpush1.msra.mxu0 0.0
    %2110 = vmatprep.subr.mxu0 0.0
    %2111 = vmatpush1.msra.mxu0 0.0
    %2112 = vmatprep.subr.mxu0 0.0
    %2113 = vmatpush1.msra.mxu0 0.0
    %2114 = vmatprep.subr.mxu0 0.0
    %2115 = vmatpush1.msra.mxu0 0.0
    %2116 = vmatprep.subr.mxu0 0.0
    %2117 = vmatpush1.msra.mxu0 0.0
    %2118 = vmatprep.subr.mxu0 0.0
    %2119 = vmatpush1.msra.mxu0 0.0
    %2120 = vmatprep.subr.mxu0 0.0
    %2121 = vmatpush1.msra.mxu0 0.0
    %2122 = vmatprep.subr.mxu0 0.0
    %2123 = vmatpush1.msra.mxu0 0.0
    %2124 = vmatprep.mubr.f32.mxu0 0.0
    %v2125 = vand.u32 %v2048, 4294901760
    %v2126 = vsub.f32 %v2048, %v2125
    %v2127 = vand.u32 %v2126, 4294901760
    %v2128 = vsub.f32 %v2126, %v2127
    %v2129 = vand.u32 %v2128, 4294901760
    %2130 = vmatmul.mubr.f32.gmra.mrb[0].mxu0 %v2129
    %v2131 = vpop.f32.mrb[0].mxu0
    %v2132 = vadd.f32 %v2040, %v2131
    %v2133 = vpop.f32.mrb[0].mxu0
    %2134 = vmatprep.mubr.f32.mxu0 0.0
    %v2135 = vand.u32 %v2051, 4294901760
    %v2136 = vsub.f32 %v2051, %v2135
    %v2137 = vand.u32 %v2136, 4294901760
    %v2138 = vsub.f32 %v2136, %v2137
    %v2139 = vand.u32 %v2138, 4294901760
    %2140 = vmatmul.mubr.f32.gmra.mrb[0].mxu0 %v2139
    %v2141 = vpop.f32.mrb[0].mxu0
    %v2142 = vadd.f32 %v2044, %v2141
    %v2143 = vpop.f32.mrb[0].mxu0
    %2144 = vdwg.mxu0
    %2145 = vmatprep.subr.mxu0 0.0
    %v2146 = vand.u32 %v2019, 4294901760
    %v2147 = vsub.f32 %v2019, %v2146
    %v2148 = vand.u32 %v2147, 4294901760
    %v2149 = vsub.f32 %v2147, %v2148
    %v2150 = vand.u32 %v2149, 4294901760
    %2151 = vmatpush1.msra.mxu0 %v2150
    %2152 = vmatprep.subr.mxu0 0.0
    %v2153 = vand.u32 %v2025, 4294901760
    %v2154 = vsub.f32 %v2025, %v2153
    %v2155 = vand.u32 %v2154, 4294901760
    %v2156 = vsub.f32 %v2154, %v2155
    %v2157 = vand.u32 %v2156, 4294901760
    %2158 = vmatpush1.msra.mxu0 %v2157
    %2159 = vmatprep.subr.mxu0 0.0
    %v2160 = vand.u32 %v1529, 4294901760
    %v2161 = vsub.f32 %v1529, %v2160
    %v2162 = vand.u32 %v2161, 4294901760
    %v2163 = vsub.f32 %v2161, %v2162
    %v2164 = vand.u32 %v2163, 4294901760
    %2165 = vmatpush1.msra.mxu0 %v2164
    %2166 = vmatprep.subr.mxu0 0.0
    %v2167 = vand.u32 %v1530, 4294901760
    %v2168 = vsub.f32 %v1530, %v2167
    %v2169 = vand.u32 %v2168, 4294901760
    %v2170 = vsub.f32 %v2168, %v2169
    %v2171 = vand.u32 %v2170, 4294901760
    %2172 = vmatpush1.msra.mxu0 %v2171
    %2173 = vmatprep.subr.mxu0 0.0
    %v2174 = vand.u32 %v2031, 4294901760
    %v2175 = vsub.f32 %v2031, %v2174
    %v2176 = vand.u32 %v2175, 4294901760
    %v2177 = vsub.f32 %v2175, %v2176
    %v2178 = vand.u32 %v2177, 4294901760
    %2179 = vmatpush1.msra.mxu0 %v2178
    %2180 = vmatprep.subr.mxu0 0.0
    %v2181 = vand.u32 %v2033, 4294901760
    %v2182 = vsub.f32 %v2033, %v2181
    %v2183 = vand.u32 %v2182, 4294901760
    %v2184 = vsub.f32 %v2182, %v2183
    %v2185 = vand.u32 %v2184, 4294901760
    %2186 = vmatpush1.msra.mxu0 %v2185
    %2187 = vmatprep.subr.mxu0 0.0
    %v2188 = vand.u32 %v521, 4294901760
    %v2189 = vsub.f32 %v521, %v2188
    %v2190 = vand.u32 %v2189, 4294901760
    %v2191 = vsub.f32 %v2189, %v2190
    %v2192 = vand.u32 %v2191, 4294901760
    %2193 = vmatpush1.msra.mxu0 %v2192
    %2194 = vmatprep.subr.mxu0 0.0
    %2195 = vmatpush1.msra.mxu0 0.0
    %2196 = vmatprep.subr.mxu0 0.0
    %2197 = vmatpush1.msra.mxu0 0.0
    %2198 = vmatprep.subr.mxu0 0.0
    %2199 = vmatpush1.msra.mxu0 0.0
    %2200 = vmatprep.subr.mxu0 0.0
    %2201 = vmatpush1.msra.mxu0 0.0
    %2202 = vmatprep.subr.mxu0 0.0
    %2203 = vmatpush1.msra.mxu0 0.0
    %2204 = vmatprep.subr.mxu0 0.0
    %2205 = vmatpush1.msra.mxu0 0.0
    %2206 = vmatprep.subr.mxu0 0.0
    %2207 = vmatpush1.msra.mxu0 0.0
    %2208 = vmatprep.subr.mxu0 0.0
    %2209 = vmatpush1.msra.mxu0 0.0
    %2210 = vmatprep.subr.mxu0 0.0
    %2211 = vmatpush1.msra.mxu0 0.0
    %2212 = vmatprep.subr.mxu0 0.0
    %2213 = vmatpush1.msra.mxu0 0.0
    %2214 = vmatprep.subr.mxu0 0.0
    %2215 = vmatpush1.msra.mxu0 0.0
    %2216 = vmatprep.subr.mxu0 0.0
    %2217 = vmatpush1.msra.mxu0 0.0
    %2218 = vmatprep.subr.mxu0 0.0
    %2219 = vmatpush1.msra.mxu0 0.0
    %2220 = vmatprep.subr.mxu0 0.0
    %2221 = vmatpush1.msra.mxu0 0.0
    %2222 = vmatprep.subr.mxu0 0.0
    %2223 = vmatpush1.msra.mxu0 0.0
    %2224 = vmatprep.subr.mxu0 0.0
    %2225 = vmatpush1.msra.mxu0 0.0
    %2226 = vmatprep.subr.mxu0 0.0
    %2227 = vmatpush1.msra.mxu0 0.0
    %2228 = vmatprep.subr.mxu0 0.0
    %2229 = vmatpush1.msra.mxu0 0.0
    %2230 = vmatprep.subr.mxu0 0.0
    %2231 = vmatpush1.msra.mxu0 0.0
    %2232 = vmatprep.subr.mxu0 0.0
    %2233 = vmatpush1.msra.mxu0 0.0
    %2234 = vmatprep.subr.mxu0 0.0
    %2235 = vmatpush1.msra.mxu0 0.0
    %2236 = vmatprep.subr.mxu0 0.0
    %2237 = vmatpush1.msra.mxu0 0.0
    %2238 = vmatprep.subr.mxu0 0.0
    %2239 = vmatpush1.msra.mxu0 0.0
    %2240 = vmatprep.subr.mxu0 0.0
    %2241 = vmatpush1.msra.mxu0 0.0
    %2242 = vmatprep.subr.mxu0 0.0
    %2243 = vmatpush1.msra.mxu0 0.0
    %2244 = vmatprep.mubr.f32.mxu0 0.0
    %v2245 = vand.u32 %v2048, 4294901760
    %2246 = vmatmul.mubr.f32.gmra.mrb[0].mxu0 %v2245
    %v2247 = vpop.f32.mrb[0].mxu0
    %v2248 = vadd.f32 %v2132, %v2247
    %v2249 = vpop.f32.mrb[0].mxu0
    %2250 = vmatprep.mubr.f32.mxu0 0.0
    %v2251 = vand.u32 %v2051, 4294901760
    %2252 = vmatmul.mubr.f32.gmra.mrb[0].mxu0 %v2251
    %v2253 = vpop.f32.mrb[0].mxu0
    %v2254 = vadd.f32 %v2142, %v2253
    %v2255 = vpop.f32.mrb[0].mxu0
    %2256 = vdwg.mxu0
    %2257 = vmatprep.subr.mxu0 0.0
    %v2258 = vand.u32 %v2019, 4294901760
    %v2259 = vsub.f32 %v2019, %v2258
    %2260 = vmatpush1.msra.mxu0 %v2259
    %2261 = vmatprep.subr.mxu0 0.0
    %v2262 = vand.u32 %v2025, 4294901760
    %v2263 = vsub.f32 %v2025, %v2262
    %2264 = vmatpush1.msra.mxu0 %v2263
    %2265 = vmatprep.subr.mxu0 0.0
    %v2266 = vand.u32 %v1529, 4294901760
    %v2267 = vsub.f32 %v1529, %v2266
    %2268 = vmatpush1.msra.mxu0 %v2267
    %2269 = vmatprep.subr.mxu0 0.0
    %v2270 = vand.u32 %v1530, 4294901760
    %v2271 = vsub.f32 %v1530, %v2270
    %2272 = vmatpush1.msra.mxu0 %v2271
    %2273 = vmatprep.subr.mxu0 0.0
    %v2274 = vand.u32 %v2031, 4294901760
    %v2275 = vsub.f32 %v2031, %v2274
    %2276 = vmatpush1.msra.mxu0 %v2275
    %2277 = vmatprep.subr.mxu0 0.0
    %v2278 = vand.u32 %v2033, 4294901760
    %v2279 = vsub.f32 %v2033, %v2278
    %2280 = vmatpush1.msra.mxu0 %v2279
    %2281 = vmatprep.subr.mxu0 0.0
    %v2282 = vand.u32 %v521, 4294901760
    %v2283 = vsub.f32 %v521, %v2282
    %2284 = vmatpush1.msra.mxu0 %v2283
    %2285 = vmatprep.subr.mxu0 0.0
    %2286 = vmatpush1.msra.mxu0 0.0
    %2287 = vmatprep.subr.mxu0 0.0
    %2288 = vmatpush1.msra.mxu0 0.0
    %2289 = vmatprep.subr.mxu0 0.0
    %2290 = vmatpush1.msra.mxu0 0.0
    %2291 = vmatprep.subr.mxu0 0.0
    %2292 = vmatpush1.msra.mxu0 0.0
    %2293 = vmatprep.subr.mxu0 0.0
    %2294 = vmatpush1.msra.mxu0 0.0
    %2295 = vmatprep.subr.mxu0 0.0
    %2296 = vmatpush1.msra.mxu0 0.0
    %2297 = vmatprep.subr.mxu0 0.0
    %2298 = vmatpush1.msra.mxu0 0.0
    %2299 = vmatprep.subr.mxu0 0.0
    %2300 = vmatpush1.msra.mxu0 0.0
    %2301 = vmatprep.subr.mxu0 0.0
    %2302 = vmatpush1.msra.mxu0 0.0
    %2303 = vmatprep.subr.mxu0 0.0
    %2304 = vmatpush1.msra.mxu0 0.0
    %2305 = vmatprep.subr.mxu0 0.0
    %2306 = vmatpush1.msra.mxu0 0.0
    %2307 = vmatprep.subr.mxu0 0.0
    %2308 = vmatpush1.msra.mxu0 0.0
    %2309 = vmatprep.subr.mxu0 0.0
    %2310 = vmatpush1.msra.mxu0 0.0
    %2311 = vmatprep.subr.mxu0 0.0
    %2312 = vmatpush1.msra.mxu0 0.0
    %2313 = vmatprep.subr.mxu0 0.0
    %2314 = vmatpush1.msra.mxu0 0.0
    %2315 = vmatprep.subr.mxu0 0.0
    %2316 = vmatpush1.msra.mxu0 0.0
    %2317 = vmatprep.subr.mxu0 0.0
    %2318 = vmatpush1.msra.mxu0 0.0
    %2319 = vmatprep.subr.mxu0 0.0
    %2320 = vmatpush1.msra.mxu0 0.0
    %2321 = vmatprep.subr.mxu0 0.0
    %2322 = vmatpush1.msra.mxu0 0.0
    %2323 = vmatprep.subr.mxu0 0.0
    %2324 = vmatpush1.msra.mxu0 0.0
    %2325 = vmatprep.subr.mxu0 0.0
    %2326 = vmatpush1.msra.mxu0 0.0
    %2327 = vmatprep.subr.mxu0 0.0
    %2328 = vmatpush1.msra.mxu0 0.0
    %2329 = vmatprep.subr.mxu0 0.0
    %2330 = vmatpush1.msra.mxu0 0.0
    %2331 = vmatprep.subr.mxu0 0.0
    %2332 = vmatpush1.msra.mxu0 0.0
    %2333 = vmatprep.subr.mxu0 0.0
    %2334 = vmatpush1.msra.mxu0 0.0
    %2335 = vmatprep.mubr.f32.mxu0 0.0
    %v2336 = vand.u32 %v2048, 4294901760
    %v2337 = vsub.f32 %v2048, %v2336
    %2338 = vmatmul.mubr.f32.gmra.mrb[0].mxu0 %v2337
    %v2339 = vpop.f32.mrb[0].mxu0
    %v2340 = vadd.f32 %v2248, %v2339
    %v2341 = vpop.f32.mrb[0].mxu0
    %2342 = vmatprep.mubr.f32.mxu0 0.0
    %v2343 = vand.u32 %v2051, 4294901760
    %v2344 = vsub.f32 %v2051, %v2343
    %2345 = vmatmul.mubr.f32.gmra.mrb[0].mxu0 %v2344
    %v2346 = vpop.f32.mrb[0].mxu0
    %v2347 = vadd.f32 %v2254, %v2346
    %v2348 = vpop.f32.mrb[0].mxu0
    %2349 = vdwg.mxu0
    %2350 = vmatprep.subr.mxu0 0.0
    %v2351 = vand.u32 %v2019, 4294901760
    %2352 = vmatpush1.msra.mxu0 %v2351
    %2353 = vmatprep.subr.mxu0 0.0
    %v2354 = vand.u32 %v2025, 4294901760
    %2355 = vmatpush1.msra.mxu0 %v2354
    %2356 = vmatprep.subr.mxu0 0.0
    %v2357 = vand.u32 %v1529, 4294901760
    %2358 = vmatpush1.msra.mxu0 %v2357
    %2359 = vmatprep.subr.mxu0 0.0
    %v2360 = vand.u32 %v1530, 4294901760
    %2361 = vmatpush1.msra.mxu0 %v2360
    %2362 = vmatprep.subr.mxu0 0.0
    %v2363 = vand.u32 %v2031, 4294901760
    %2364 = vmatpush1.msra.mxu0 %v2363
    %2365 = vmatprep.subr.mxu0 0.0
    %v2366 = vand.u32 %v2033, 4294901760
    %2367 = vmatpush1.msra.mxu0 %v2366
    %2368 = vmatprep.subr.mxu0 0.0
    %v2369 = vand.u32 %v521, 4294901760
    %2370 = vmatpush1.msra.mxu0 %v2369
    %2371 = vmatprep.subr.mxu0 0.0
    %2372 = vmatpush1.msra.mxu0 0.0
    %2373 = vmatprep.subr.mxu0 0.0
    %2374 = vmatpush1.msra.mxu0 0.0
    %2375 = vmatprep.subr.mxu0 0.0
    %2376 = vmatpush1.msra.mxu0 0.0
    %2377 = vmatprep.subr.mxu0 0.0
    %2378 = vmatpush1.msra.mxu0 0.0
    %2379 = vmatprep.subr.mxu0 0.0
    %2380 = vmatpush1.msra.mxu0 0.0
    %2381 = vmatprep.subr.mxu0 0.0
    %2382 = vmatpush1.msra.mxu0 0.0
    %2383 = vmatprep.subr.mxu0 0.0
    %2384 = vmatpush1.msra.mxu0 0.0
    %2385 = vmatprep.subr.mxu0 0.0
    %2386 = vmatpush1.msra.mxu0 0.0
    %2387 = vmatprep.subr.mxu0 0.0
    %2388 = vmatpush1.msra.mxu0 0.0
    %2389 = vmatprep.subr.mxu0 0.0
    %2390 = vmatpush1.msra.mxu0 0.0
    %2391 = vmatprep.subr.mxu0 0.0
    %2392 = vmatpush1.msra.mxu0 0.0
    %2393 = vmatprep.subr.mxu0 0.0
    %2394 = vmatpush1.msra.mxu0 0.0
    %2395 = vmatprep.subr.mxu0 0.0
    %2396 = vmatpush1.msra.mxu0 0.0
    %2397 = vmatprep.subr.mxu0 0.0
    %2398 = vmatpush1.msra.mxu0 0.0
    %2399 = vmatprep.subr.mxu0 0.0
    %2400 = vmatpush1.msra.mxu0 0.0
    %2401 = vmatprep.subr.mxu0 0.0
    %2402 = vmatpush1.msra.mxu0 0.0
    %2403 = vmatprep.subr.mxu0 0.0
    %2404 = vmatpush1.msra.mxu0 0.0
    %2405 = vmatprep.subr.mxu0 0.0
    %2406 = vmatpush1.msra.mxu0 0.0
    %2407 = vmatprep.subr.mxu0 0.0
    %2408 = vmatpush1.msra.mxu0 0.0
    %2409 = vmatprep.subr.mxu0 0.0
    %2410 = vmatpush1.msra.mxu0 0.0
    %2411 = vmatprep.subr.mxu0 0.0
    %2412 = vmatpush1.msra.mxu0 0.0
    %2413 = vmatprep.subr.mxu0 0.0
    %2414 = vmatpush1.msra.mxu0 0.0
    %2415 = vmatprep.subr.mxu0 0.0
    %2416 = vmatpush1.msra.mxu0 0.0
    %2417 = vmatprep.subr.mxu0 0.0
    %2418 = vmatpush1.msra.mxu0 0.0
    %2419 = vmatprep.subr.mxu0 0.0
    %2420 = vmatpush1.msra.mxu0 0.0
    %2421 = vmatprep.mubr.f32.mxu0 0.0
    %v2422 = vand.u32 %v2048, 4294901760
    %v2423 = vsub.f32 %v2048, %v2422
    %v2424 = vand.u32 %v2423, 4294901760
    %2425 = vmatmul.mubr.f32.gmra.mrb[0].mxu0 %v2424
    %v2426 = vpop.f32.mrb[0].mxu0
    %v2427 = vadd.f32 %v2340, %v2426
    %v2428 = vpop.f32.mrb[0].mxu0
    %2429 = vmatprep.mubr.f32.mxu0 0.0
    %v2430 = vand.u32 %v2051, 4294901760
    %v2431 = vsub.f32 %v2051, %v2430
    %v2432 = vand.u32 %v2431, 4294901760
    %2433 = vmatmul.mubr.f32.gmra.mrb[0].mxu0 %v2432
    %v2434 = vpop.f32.mrb[0].mxu0
    %v2435 = vadd.f32 %v2347, %v2434
    %v2436 = vpop.f32.mrb[0].mxu0
    %2437 = vdwg.mxu0
    %2438 = vmatprep.subr.mxu0 0.0
    %v2439 = vand.u32 %v2019, 4294901760
    %v2440 = vsub.f32 %v2019, %v2439
    %v2441 = vand.u32 %v2440, 4294901760
    %2442 = vmatpush1.msra.mxu0 %v2441
    %2443 = vmatprep.subr.mxu0 0.0
    %v2444 = vand.u32 %v2025, 4294901760
    %v2445 = vsub.f32 %v2025, %v2444
    %v2446 = vand.u32 %v2445, 4294901760
    %2447 = vmatpush1.msra.mxu0 %v2446
    %2448 = vmatprep.subr.mxu0 0.0
    %v2449 = vand.u32 %v1529, 4294901760
    %v2450 = vsub.f32 %v1529, %v2449
    %v2451 = vand.u32 %v2450, 4294901760
    %2452 = vmatpush1.msra.mxu0 %v2451
    %2453 = vmatprep.subr.mxu0 0.0
    %v2454 = vand.u32 %v1530, 4294901760
    %v2455 = vsub.f32 %v1530, %v2454
    %v2456 = vand.u32 %v2455, 4294901760
    %2457 = vmatpush1.msra.mxu0 %v2456
    %2458 = vmatprep.subr.mxu0 0.0
    %v2459 = vand.u32 %v2031, 4294901760
    %v2460 = vsub.f32 %v2031, %v2459
    %v2461 = vand.u32 %v2460, 4294901760
    %2462 = vmatpush1.msra.mxu0 %v2461
    %2463 = vmatprep.subr.mxu0 0.0
    %v2464 = vand.u32 %v2033, 4294901760
    %v2465 = vsub.f32 %v2033, %v2464
    %v2466 = vand.u32 %v2465, 4294901760
    %2467 = vmatpush1.msra.mxu0 %v2466
    %2468 = vmatprep.subr.mxu0 0.0
    %v2469 = vand.u32 %v521, 4294901760
    %v2470 = vsub.f32 %v521, %v2469
    %v2471 = vand.u32 %v2470, 4294901760
    %2472 = vmatpush1.msra.mxu0 %v2471
    %2473 = vmatprep.subr.mxu0 0.0
    %2474 = vmatpush1.msra.mxu0 0.0
    %2475 = vmatprep.subr.mxu0 0.0
    %2476 = vmatpush1.msra.mxu0 0.0
    %2477 = vmatprep.subr.mxu0 0.0
    %2478 = vmatpush1.msra.mxu0 0.0
    %2479 = vmatprep.subr.mxu0 0.0
    %2480 = vmatpush1.msra.mxu0 0.0
    %2481 = vmatprep.subr.mxu0 0.0
    %2482 = vmatpush1.msra.mxu0 0.0
    %2483 = vmatprep.subr.mxu0 0.0
    %2484 = vmatpush1.msra.mxu0 0.0
    %2485 = vmatprep.subr.mxu0 0.0
    %2486 = vmatpush1.msra.mxu0 0.0
    %2487 = vmatprep.subr.mxu0 0.0
    %2488 = vmatpush1.msra.mxu0 0.0
    %2489 = vmatprep.subr.mxu0 0.0
    %2490 = vmatpush1.msra.mxu0 0.0
    %2491 = vmatprep.subr.mxu0 0.0
    %2492 = vmatpush1.msra.mxu0 0.0
    %2493 = vmatprep.subr.mxu0 0.0
    %2494 = vmatpush1.msra.mxu0 0.0
    %2495 = vmatprep.subr.mxu0 0.0
    %2496 = vmatpush1.msra.mxu0 0.0
    %2497 = vmatprep.subr.mxu0 0.0
    %2498 = vmatpush1.msra.mxu0 0.0
    %2499 = vmatprep.subr.mxu0 0.0
    %2500 = vmatpush1.msra.mxu0 0.0
    %2501 = vmatprep.subr.mxu0 0.0
    %2502 = vmatpush1.msra.mxu0 0.0
    %2503 = vmatprep.subr.mxu0 0.0
    %2504 = vmatpush1.msra.mxu0 0.0
    %2505 = vmatprep.subr.mxu0 0.0
    %2506 = vmatpush1.msra.mxu0 0.0
    %2507 = vmatprep.subr.mxu0 0.0
    %2508 = vmatpush1.msra.mxu0 0.0
    %2509 = vmatprep.subr.mxu0 0.0
    %2510 = vmatpush1.msra.mxu0 0.0
    %2511 = vmatprep.subr.mxu0 0.0
    %2512 = vmatpush1.msra.mxu0 0.0
    %2513 = vmatprep.subr.mxu0 0.0
    %2514 = vmatpush1.msra.mxu0 0.0
    %2515 = vmatprep.subr.mxu0 0.0
    %2516 = vmatpush1.msra.mxu0 0.0
    %2517 = vmatprep.subr.mxu0 0.0
    %2518 = vmatpush1.msra.mxu0 0.0
    %2519 = vmatprep.subr.mxu0 0.0
    %2520 = vmatpush1.msra.mxu0 0.0
    %2521 = vmatprep.subr.mxu0 0.0
    %2522 = vmatpush1.msra.mxu0 0.0
    %2523 = vmatprep.mubr.f32.mxu0 0.0
    %v2524 = vand.u32 %v2048, 4294901760
    %2525 = vmatmul.mubr.f32.gmra.mrb[0].mxu0 %v2524
    %v2526 = vpop.f32.mrb[0].mxu0
    %v2527 = vadd.f32 %v2427, %v2526
    %v2528 = vpop.f32.mrb[0].mxu0
    %2529 = vmatprep.mubr.f32.mxu0 0.0
    %v2530 = vand.u32 %v2051, 4294901760
    %2531 = vmatmul.mubr.f32.gmra.mrb[0].mxu0 %v2530
    %v2532 = vpop.f32.mrb[0].mxu0
    %v2533 = vadd.f32 %v2435, %v2532
    %v2534 = vpop.f32.mrb[0].mxu0
    %2535 = vdwg.mxu0
    %2536 = vmatprep.subr.mxu0 0.0
    %v2537 = vand.u32 %v2019, 4294901760
    %2538 = vmatpush1.msra.mxu0 %v2537
    %2539 = vmatprep.subr.mxu0 0.0
    %v2540 = vand.u32 %v2025, 4294901760
    %2541 = vmatpush1.msra.mxu0 %v2540
    %2542 = vmatprep.subr.mxu0 0.0
    %v2543 = vand.u32 %v1529, 4294901760
    %2544 = vmatpush1.msra.mxu0 %v2543
    %2545 = vmatprep.subr.mxu0 0.0
    %v2546 = vand.u32 %v1530, 4294901760
    %2547 = vmatpush1.msra.mxu0 %v2546
    %2548 = vmatprep.subr.mxu0 0.0
    %v2549 = vand.u32 %v2031, 4294901760
    %2550 = vmatpush1.msra.mxu0 %v2549
    %2551 = vmatprep.subr.mxu0 0.0
    %v2552 = vand.u32 %v2033, 4294901760
    %2553 = vmatpush1.msra.mxu0 %v2552
    %2554 = vmatprep.subr.mxu0 0.0
    %v2555 = vand.u32 %v521, 4294901760
    %2556 = vmatpush1.msra.mxu0 %v2555
    %2557 = vmatprep.subr.mxu0 0.0
    %2558 = vmatpush1.msra.mxu0 0.0
    %2559 = vmatprep.subr.mxu0 0.0
    %2560 = vmatpush1.msra.mxu0 0.0
    %2561 = vmatprep.subr.mxu0 0.0
    %2562 = vmatpush1.msra.mxu0 0.0
    %2563 = vmatprep.subr.mxu0 0.0
    %2564 = vmatpush1.msra.mxu0 0.0
    %2565 = vmatprep.subr.mxu0 0.0
    %2566 = vmatpush1.msra.mxu0 0.0
    %2567 = vmatprep.subr.mxu0 0.0
    %2568 = vmatpush1.msra.mxu0 0.0
    %2569 = vmatprep.subr.mxu0 0.0
    %2570 = vmatpush1.msra.mxu0 0.0
    %2571 = vmatprep.subr.mxu0 0.0
    %2572 = vmatpush1.msra.mxu0 0.0
    %2573 = vmatprep.subr.mxu0 0.0
    %2574 = vmatpush1.msra.mxu0 0.0
    %2575 = vmatprep.subr.mxu0 0.0
    %2576 = vmatpush1.msra.mxu0 0.0
    %2577 = vmatprep.subr.mxu0 0.0
    %2578 = vmatpush1.msra.mxu0 0.0
    %2579 = vmatprep.subr.mxu0 0.0
    %2580 = vmatpush1.msra.mxu0 0.0
    %2581 = vmatprep.subr.mxu0 0.0
    %2582 = vmatpush1.msra.mxu0 0.0
    %2583 = vmatprep.subr.mxu0 0.0
    %2584 = vmatpush1.msra.mxu0 0.0
    %2585 = vmatprep.subr.mxu0 0.0
    %2586 = vmatpush1.msra.mxu0 0.0
    %2587 = vmatprep.subr.mxu0 0.0
    %2588 = vmatpush1.msra.mxu0 0.0
    %2589 = vmatprep.subr.mxu0 0.0
    %2590 = vmatpush1.msra.mxu0 0.0
    %2591 = vmatprep.subr.mxu0 0.0
    %2592 = vmatpush1.msra.mxu0 0.0
    %2593 = vmatprep.subr.mxu0 0.0
    %2594 = vmatpush1.msra.mxu0 0.0
    %2595 = vmatprep.subr.mxu0 0.0
    %2596 = vmatpush1.msra.mxu0 0.0
    %2597 = vmatprep.subr.mxu0 0.0
    %2598 = vmatpush1.msra.mxu0 0.0
    %2599 = vmatprep.subr.mxu0 0.0
    %2600 = vmatpush1.msra.mxu0 0.0
    %2601 = vmatprep.subr.mxu0 0.0
    %2602 = vmatpush1.msra.mxu0 0.0
    %2603 = vmatprep.subr.mxu0 0.0
    %2604 = vmatpush1.msra.mxu0 0.0
    %2605 = vmatprep.subr.mxu0 0.0
    %2606 = vmatpush1.msra.mxu0 0.0
    %2607 = vmatprep.mubr.f32.mxu0 0.0
    %v2608 = vand.u32 %v2048, 4294901760
    %2609 = vmatmul.mubr.f32.gmra.mrb[0].mxu0 %v2608
    %v2610 = vpop.f32.mrb[0].mxu0
    %v2611 = vadd.f32 %v2527, %v2610
    %v2612 = vpop.f32.mrb[0].mxu0
    %2613 = vmatprep.mubr.f32.mxu0 0.0
    %v2614 = vand.u32 %v2051, 4294901760
    %2615 = vmatmul.mubr.f32.gmra.mrb[0].mxu0 %v2614
    %v2616 = vpop.f32.mrb[0].mxu0
    %v2617 = vadd.f32 %v2533, %v2616
    %v2618 = vpop.f32.mrb[0].mxu0
    %2619 = vdwg.mxu0
    %2620 = vst.msk [vmem:[#allocation7] sm:$0xff] %vm1532, %v2611
    %2621 = vst.msk [vmem:[#allocation7 + $0x8] sm:$0xff] %vm1532, %v2617
    // Predicated region
    $region18: #{fwd.1} parent=1 // pred_check
      _
    $region19: #{fwd.1} parent=1 // pred_check_branch
      %2623 = sbr.rel (0) target = $region21
    $region20: #{fwd.1} parent=1 // pred_region
      %s2625 = ssub.s32 256, 256
      %2626 = vsyncadd [#allocation4], %s2625
      %s2627 = sshll.u32 [#allocation7], 4
      %s2628 = int_to_ptr.vmem [resolvable:$true] %s2627
      %2633 = dma.vmem_to_hbm [thread:$0]  %s2628, 256, %s2, [#allocation4], 128, 128, 8
    $region21: #{fwd.1} parent=1 // pred_fallthru
      _
    // Predicated region
    $region22: #{fwd.1} parent=1 // pred_check
      _
    $region23: #{fwd.1} parent=1 // pred_check_branch
      %2635 = sbr.rel (0) target = $region25
    $region24: #{fwd.1} parent=1 // pred_region
      %2636 = dma.done [#allocation4], 256
    $region25: #{fwd.1} parent=1 // pred_fallthru
      _
    %2637 = vsyncpa [#allocation3], 1
    %2638 = vsyncpa [#allocation6], 1
    %2639 = vsyncpa [#allocation4], 1

</llo_original>
